<compile_context>
chip_gen: v7x
topology: tpu7x:2x2x1
jax: 0.10.0
libtpu: 0.0.40
codegen_flags: <defaults>
</compile_context>

<pallas_src>
import functools

import jax
import jax.numpy as jnp
import numpy as np
from jax.experimental import pallas as pl
from jax.experimental.pallas import tpu as pltpu

KH = KW = 3                      # 3x3 conv
_SUBLANE = 8
_VMEM_STEP_BUDGET = 24 << 20     # per-step VMEM target (safe on v7x's 64 MiB)
_MAX_IMAGES_PER_STEP = 8


def _round_up(x, m):
    return ((x + m - 1) // m) * m


def _cdiv(a, b):
    return -(-a // b)


def _quantize_steps(g):
    """Quantize grid length to a few fixed values to limit Mosaic recompiles."""
    if g <= 2:
        return g
    if g <= 4:
        return 4
    if g <= 8:
        return 8
    return _round_up(g, 8)


def _conv3x3_bias_relu_kernel(x_ref, w_ref, b_ref, o_ref, patches_ref, *, WB, CIN_PAD):
    """Fused 3x3 same-conv (im2col matmul) + bias + ReLU for B canvas images.

    x_ref:       (CIN_PAD, B*hw)        images concatenated along lanes, each embedded
                                        in a zero canvas with a >=1-pixel border
    w_ref:       (Cout, 9*CIN_PAD)      conv weights, frozen-BN scale folded, channel-padded
    b_ref:       (Cout, 1)              frozen-BN bias
    o_ref:       (Cout, B*hw)           output (lane-dense, multiple of 128)
    patches_ref: (9*CIN_PAD, B*hw)      VMEM scratch, 8-sublane aligned tap slabs
    WB:          static canvas width (flat-index stride of one image row)
    """
    lanes = x_ref.shape[1]
    x = x_ref[...]

    # im2col: each 3x3 tap is one static lane rotation (XLU slot) — no border
    # masks needed because every image carries its own zero border, and
    # wrapped / cross-image lanes only ever land in the border rows/cols that
    # the wrapper crops away.
    for k in range(KH * KW):
        dy = k // KW - 1
        dx = k % KW - 1
        s = dy * WB + dx                                  # flat-index shift of this tap
        shifted = x if s == 0 else pltpu.roll(x, shift=(-s) % lanes, axis=1)
        patches_ref[k * CIN_PAD:(k + 1) * CIN_PAD, :] = shifted   # full 8-sublane tiles

    # One MXU matmul (K = 9*CIN_PAD = 72, single pass) for all B images.
    acc = jnp.dot(w_ref[...], patches_ref[...], preferred_element_type=jnp.float32)
    o_ref[...] = jnp.maximum(acc + b_ref[...], 0.0).astype(o_ref.dtype)


@functools.lru_cache(maxsize=None)
def _build_batched_conv(grid_n, imgs_per_step, cin_pad, cout, hw, wb, vmem_limit):
    """One gridded pallas_call; each step processes imgs_per_step canvas images."""
    lanes = imgs_per_step * hw
    kernel = functools.partial(_conv3x3_bias_relu_kernel, WB=wb, CIN_PAD=cin_pad)
    call = pl.pallas_call(
        kernel,
        out_shape=jax.ShapeDtypeStruct((cout, grid_n * lanes), jnp.float32),
        grid_spec=pltpu.PrefetchScalarGridSpec(
            num_scalar_prefetch=0,
            grid=(grid_n,),
            in_specs=[
                pl.BlockSpec((cin_pad, lanes), lambda i: (0, i)),           # B images / step
                pl.BlockSpec((cout, KH * KW * cin_pad), lambda i: (0, 0)),  # resident weights
                pl.BlockSpec((cout, 1), lambda i: (0, 0)),                  # resident bias
            ],
            out_specs=pl.BlockSpec((cout, lanes), lambda i: (0, i)),
            scratch_shapes=[pltpu.VMEM((KH * KW * cin_pad, lanes), jnp.float32)],
        ),
        compiler_params=pltpu.CompilerParams(
            dimension_semantics=("parallel",),      # shard steps across v7x's 2 TCs
            vmem_limit_bytes=vmem_limit,
        ),
    )
    return jax.jit(call)


class LabelFeatureExtractorPallas:
    """Mirrors LabelFeatureExtractor.forward: run the (frozen) feature
    extractor on a list of class images of different sizes, returning a list
    of (1, Cout, H, W) feature maps."""

    def __init__(self, weight, scale, bias):
        # weight: (KH, KW, Cin, Cout); frozen-BN scale/bias: (Cout,)
        kh, kw, cin, cout = (int(d) for d in weight.shape)
        self.cin = cin
        self.cin_pad = _round_up(cin, _SUBLANE)   # sublane-aligned channel blocks
        self.cout = cout
        # Fold frozen-BN scale into the conv weights (exact: both linear), pad
        # the channel axis to cin_pad with zero rows (matches the zero-padded
        # input channels), and lay out tap-major for the im2col matmul.
        w_t = jnp.transpose(weight, (3, 0, 1, 2))               # (Cout, KH, KW, Cin)
        w_t = w_t * scale[:, None, None, None]
        w_t = jnp.pad(w_t, ((0, 0), (0, 0), (0, 0), (0, self.cin_pad - cin)))
        self.w_folded = w_t.reshape(cout, kh * kw * self.cin_pad)  # (Cout, 9*cin_pad)
        self.bias = bias.reshape(cout, 1)

    def __call__(self, class_image_list):
        n = len(class_image_list)
        shapes = [(int(img.shape[1]), int(img.shape[2])) for img in class_image_list]

        # Bucket canvas, coarsely quantized to limit recompiles, with a
        # guaranteed >=1-pixel zero border on every side (== the conv's "same"
        # padding).  hw is a multiple of 512 -> lane-dense, unmasked stores.
        hb = _round_up(max(h for h, _ in shapes) + 2, 16)
        wb = _round_up(max(w for _, w in shapes) + 2, 32)
        hw = hb * wb
        # TODO(synk): for very large class images (canvas footprint beyond the
        # VMEM budget even at 1 image/step) add a spatial grid axis with 1-row
        # halo tiles instead of growing the canvas.

        # Images per grid step: amortize per-step overhead across several tiny
        # class images, keep the per-step VMEM footprint within budget, and
        # keep >=2 grid steps so megacore (v7x) uses both TensorCores.
        per_img_bytes = 4 * hw * (KH * KW * self.cin_pad + 2 * self.cin_pad + 2 * self.cout)
        b = max(1, min(_MAX_IMAGES_PER_STEP,
                       _VMEM_STEP_BUDGET // max(per_img_bytes, 1),
                       _cdiv(n, 2),
                       n))
        grid_n = _quantize_steps(_cdiv(n, b))
        n_pad = grid_n * b

        # Embed each image at offset (1, 1) in its zero canvas, pad channels to
        # cin_pad, flatten HxW onto the lane axis, concatenate along lanes.
        slabs = []
        for img, (h, w) in zip(class_image_list, shapes):
            canvas = jnp.pad(img.astype(jnp.float32),
                             ((0, self.cin_pad - self.cin),
                              (1, hb - 1 - h),
                              (1, wb - 1 - w)))
            slabs.append(canvas.reshape(self.cin_pad, hw))
        if n_pad > n:
            slabs.append(jnp.zeros((self.cin_pad, (n_pad - n) * hw), jnp.float32))
        x = jnp.concatenate(slabs, axis=1)                      # (cin_pad, n_pad*hw)

        # Explicit VMEM budget (patch scratch + double-buffered in/out blocks +
        # resident weights/bias + margin); sized per step, not per call.
        lanes = b * hw
        step_bytes = 4 * (KH * KW * self.cin_pad * lanes        # patch scratch
                          + 2 * self.cin_pad * lanes            # double-buffered input
                          + 2 * self.cout * lanes               # double-buffered output
                          + 2 * self.cout * (KH * KW * self.cin_pad + 1))
        vmem_limit = int(min(max(step_bytes + (4 << 20), 32 << 20), 120 << 20))

        call = _build_batched_conv(grid_n, b, self.cin_pad, self.cout, hw, wb, vmem_limit)
        out = call(x, self.w_folded, self.bias)                 # (Cout, n_pad*hw)
        out = out.reshape(self.cout, n_pad, hb, wb)

        # Crop each image back out of its canvas (offset (1, 1)); already NCHW.
        return [out[:, i, 1:1 + h, 1:1 + w][None] for i, (h, w) in enumerate(shapes)]

    def freeze_bn(self):
        pass  # BN is already folded into the weights / bias (frozen affine)

    def freeze_blocks(self, num_blocks=0):
        pass  # TODO(synk): no gradients here; block freezing is a training-time concern


def _reference_one(class_image, weight, scale, bias):
    """Pure-JAX reference (== torch conv2d(pad=1) + affine + relu) in NCHW."""
    x = class_image[None]                                   # (1, Cin, H, W)
    w_oihw = jnp.transpose(weight, (3, 2, 0, 1))            # (Cout, Cin, KH, KW)
    y = jax.lax.conv_general_dilated(
        x, w_oihw, window_strides=(1, 1), padding="SAME",
        dimension_numbers=("NCHW", "OIHW", "NCHW"))
    y = y * scale.reshape(1, -1, 1, 1) + bias.reshape(1, -1, 1, 1)
    return jnp.maximum(y, 0.0)


if __name__ == "__main__":
    key = jax.random.PRNGKey(0)
    k_w, k_s, k_b, k_x1, k_x2, k_x3 = jax.random.split(key, 6)

    Cin, Cout = 4, 32
    weight = jax.random.normal(k_w, (KH, KW, Cin, Cout), jnp.float32) * 0.1
    scale = 1.0 + 0.05 * jax.random.normal(k_s, (Cout,), jnp.float32)
    bias = 0.05 * jax.random.normal(k_b, (Cout,), jnp.float32)

    # A list of class images with DIFFERENT spatial sizes (as in OS2D).
    class_image_list = [
        jax.random.normal(k_x1, (Cin, 16, 16), jnp.float32),
        jax.random.normal(k_x2, (Cin, 24, 16), jnp.float32),
        jax.random.normal(k_x3, (Cin, 16, 24), jnp.float32),
    ]

    extractor = LabelFeatureExtractorPallas(weight, scale, bias)
    feature_maps = extractor(class_image_list)
    feature_maps = [jax.block_until_ready(f) for f in feature_maps]

    # Correctness check against pure-JAX conv reference.
    for img, fmap in zip(class_image_list, feature_maps):
        ref = _reference_one(img, weight, scale, bias)
        np.testing.assert_allclose(np.asarray(fmap), np.asarray(ref),
                                   rtol=1e-4, atol=1e-4)
        assert fmap.shape == (1, Cout, img.shape[1], img.shape[2])

    print("KERNEL_OK")
</pallas_src>

<mosaic_0001>
module attributes {stable_mosaic.version = 11 : i64} {
  func.func @_conv3x3_bias_relu_kernel(%arg0: i32, %arg1: memref<8x2048xf32, #tpu.memory_space<vmem>>, %arg2: memref<32x72xf32, #tpu.memory_space<vmem>>, %arg3: memref<32x1xf32, #tpu.memory_space<vmem>>, %arg4: memref<32x2048xf32, #tpu.memory_space<vmem>>, %arg5: memref<72x2048xf32, #tpu.memory_space<vmem>>) attributes {dimension_semantics = [#tpu.dimension_semantics<parallel>], iteration_bounds = array<i64: 2>, scalar_prefetch = 0 : i64, scratch_operands = 1 : i64, tpu.core_type = #tpu.core_type<tc>, window_params = [{transform_indices = @transform_0, window_bounds = array<i64: 8, 2048>}, {pipeline_mode = #tpu.pipeline_mode<synchronous>, transform_indices = @transform_1, window_bounds = array<i64: 32, 72>}, {pipeline_mode = #tpu.pipeline_mode<synchronous>, transform_indices = @transform_2, window_bounds = array<i64: 32, 1>}, {transform_indices = @transform_3, window_bounds = array<i64: 32, 2048>}]} {
    %c0 = arith.constant 0 : index
    %c0_0 = arith.constant 0 : index
    %0 = vector.load %arg1[%c0, %c0_0] : memref<8x2048xf32, #tpu.memory_space<vmem>>, vector<8x2048xf32>
    %c33_i32 = arith.constant 33 : i32
    %1 = tpu.dynamic_rotate %0 by %c33_i32 dim 1 : vector<8x2048xf32>, i32 -> vector<8x2048xf32>
    %c0_1 = arith.constant 0 : index
    %c0_2 = arith.constant 0 : index
    %2 = vector.load %arg5[%c0_1, %c0_2] : memref<72x2048xf32, #tpu.memory_space<vmem>>, vector<8x2048xf32>
    tpu.vector_store %arg5[%c0_1, %c0_2], %1 {strides = array<i32>} : memref<72x2048xf32, #tpu.memory_space<vmem>>, vector<8x2048xf32>,
    %c32_i32 = arith.constant 32 : i32
    %3 = tpu.dynamic_rotate %0 by %c32_i32 dim 1 : vector<8x2048xf32>, i32 -> vector<8x2048xf32>
    %c8 = arith.constant 8 : index
    %c0_3 = arith.constant 0 : index
    %4 = vector.load %arg5[%c8, %c0_3] : memref<72x2048xf32, #tpu.memory_space<vmem>>, vector<8x2048xf32>
    tpu.vector_store %arg5[%c8, %c0_3], %3 {strides = array<i32>} : memref<72x2048xf32, #tpu.memory_space<vmem>>, vector<8x2048xf32>,
    %c31_i32 = arith.constant 31 : i32
    %5 = tpu.dynamic_rotate %0 by %c31_i32 dim 1 : vector<8x2048xf32>, i32 -> vector<8x2048xf32>
    %c16 = arith.constant 16 : index
    %c0_4 = arith.constant 0 : index
    %6 = vector.load %arg5[%c16, %c0_4] : memref<72x2048xf32, #tpu.memory_space<vmem>>, vector<8x2048xf32>
    tpu.vector_store %arg5[%c16, %c0_4], %5 {strides = array<i32>} : memref<72x2048xf32, #tpu.memory_space<vmem>>, vector<8x2048xf32>,
    %c1_i32 = arith.constant 1 : i32
    %7 = tpu.dynamic_rotate %0 by %c1_i32 dim 1 : vector<8x2048xf32>, i32 -> vector<8x2048xf32>
    %c24 = arith.constant 24 : index
    %c0_5 = arith.constant 0 : index
    %8 = vector.load %arg5[%c24, %c0_5] : memref<72x2048xf32, #tpu.memory_space<vmem>>, vector<8x2048xf32>
    tpu.vector_store %arg5[%c24, %c0_5], %7 {strides = array<i32>} : memref<72x2048xf32, #tpu.memory_space<vmem>>, vector<8x2048xf32>,
    %c32 = arith.constant 32 : index
    %c0_6 = arith.constant 0 : index
    %9 = vector.load %arg5[%c32, %c0_6] : memref<72x2048xf32, #tpu.memory_space<vmem>>, vector<8x2048xf32>
    tpu.vector_store %arg5[%c32, %c0_6], %0 {strides = array<i32>} : memref<72x2048xf32, #tpu.memory_space<vmem>>, vector<8x2048xf32>,
    %c2047_i32 = arith.constant 2047 : i32
    %10 = tpu.dynamic_rotate %0 by %c2047_i32 dim 1 : vector<8x2048xf32>, i32 -> vector<8x2048xf32>
    %c40 = arith.constant 40 : index
    %c0_7 = arith.constant 0 : index
    %11 = vector.load %arg5[%c40, %c0_7] : memref<72x2048xf32, #tpu.memory_space<vmem>>, vector<8x2048xf32>
    tpu.vector_store %arg5[%c40, %c0_7], %10 {strides = array<i32>} : memref<72x2048xf32, #tpu.memory_space<vmem>>, vector<8x2048xf32>,
    %c2017_i32 = arith.constant 2017 : i32
    %12 = tpu.dynamic_rotate %0 by %c2017_i32 dim 1 : vector<8x2048xf32>, i32 -> vector<8x2048xf32>
    %c48 = arith.constant 48 : index
    %c0_8 = arith.constant 0 : index
    %13 = vector.load %arg5[%c48, %c0_8] : memref<72x2048xf32, #tpu.memory_space<vmem>>, vector<8x2048xf32>
    tpu.vector_store %arg5[%c48, %c0_8], %12 {strides = array<i32>} : memref<72x2048xf32, #tpu.memory_space<vmem>>, vector<8x2048xf32>,
    %c2016_i32 = arith.constant 2016 : i32
    %14 = tpu.dynamic_rotate %0 by %c2016_i32 dim 1 : vector<8x2048xf32>, i32 -> vector<8x2048xf32>
    %c56 = arith.constant 56 : index
    %c0_9 = arith.constant 0 : index
    %15 = vector.load %arg5[%c56, %c0_9] : memref<72x2048xf32, #tpu.memory_space<vmem>>, vector<8x2048xf32>
    tpu.vector_store %arg5[%c56, %c0_9], %14 {strides = array<i32>} : memref<72x2048xf32, #tpu.memory_space<vmem>>, vector<8x2048xf32>,
    %c2015_i32 = arith.constant 2015 : i32
    %16 = tpu.dynamic_rotate %0 by %c2015_i32 dim 1 : vector<8x2048xf32>, i32 -> vector<8x2048xf32>
    %c64 = arith.constant 64 : index
    %c0_10 = arith.constant 0 : index
    %17 = vector.load %arg5[%c64, %c0_10] : memref<72x2048xf32, #tpu.memory_space<vmem>>, vector<8x2048xf32>
    tpu.vector_store %arg5[%c64, %c0_10], %16 {strides = array<i32>} : memref<72x2048xf32, #tpu.memory_space<vmem>>, vector<8x2048xf32>,
    %c0_11 = arith.constant 0 : index
    %c0_12 = arith.constant 0 : index
    %18 = vector.load %arg2[%c0_11, %c0_12] : memref<32x72xf32, #tpu.memory_space<vmem>>, vector<32x72xf32>
    %c0_13 = arith.constant 0 : index
    %c0_14 = arith.constant 0 : index
    %19 = vector.load %arg5[%c0_13, %c0_14] : memref<72x2048xf32, #tpu.memory_space<vmem>>, vector<72x2048xf32>
    %cst = arith.constant dense<0.000000e+00> : vector<32x2048xf32>
    %20 = tpu.matmul %18, %19, %cst {dimension_numbers = #tpu.dot_dimension_numbers<[1], [0], [0], [1], [0, 0, 1, 1], [], []>} : vector<32x72xf32>, vector<72x2048xf32>, vector<32x2048xf32> -> vector<32x2048xf32>
    %c0_15 = arith.constant 0 : index
    %c0_16 = arith.constant 0 : index
    %21 = vector.load %arg3[%c0_15, %c0_16] : memref<32x1xf32, #tpu.memory_space<vmem>>, vector<32x1xf32>
    %22 = vector.broadcast %21 : vector<32x1xf32> to vector<32x2048xf32>
    %23 = arith.addf %20, %22 : vector<32x2048xf32>
    %cst_17 = arith.constant 0.000000e+00 : f32
    %24 = vector.broadcast %cst_17 : f32 to vector<32x2048xf32>
    %25 = arith.maximumf %23, %24 : vector<32x2048xf32>
    %c0_18 = arith.constant 0 : index
    %c0_19 = arith.constant 0 : index
    %26 = vector.load %arg4[%c0_18, %c0_19] : memref<32x2048xf32, #tpu.memory_space<vmem>>, vector<32x2048xf32>
    tpu.vector_store %arg4[%c0_18, %c0_19], %25 {strides = array<i32>} : memref<32x2048xf32, #tpu.memory_space<vmem>>, vector<32x2048xf32>,
    return
  }
  func.func @transform_0(%arg0: i32) -> (i32, i32) {
    %c0_i32 = arith.constant 0 : i32
    %c0_i32_0 = arith.constant 0 : i32
    return %c0_i32, %arg0 : i32, i32
  }
  func.func @transform_1(%arg0: i32) -> (i32, i32) {
    %c0_i32 = arith.constant 0 : i32
    %c0_i32_0 = arith.constant 0 : i32
    %c0_i32_1 = arith.constant 0 : i32
    return %c0_i32, %c0_i32_0 : i32, i32
  }
  func.func @transform_2(%arg0: i32) -> (i32, i32) {
    %c0_i32 = arith.constant 0 : i32
    %c0_i32_0 = arith.constant 0 : i32
    %c0_i32_1 = arith.constant 0 : i32
    return %c0_i32, %c0_i32_0 : i32, i32
  }
  func.func @transform_3(%arg0: i32) -> (i32, i32) {
    %c0_i32 = arith.constant 0 : i32
    %c0_i32_0 = arith.constant 0 : i32
    return %c0_i32, %arg0 : i32, i32
  }
}

</mosaic_0001>

<llo_original>
// kernel: tpu_custom_call.1
$region0: #{tpu_custom_call.1}
  #allocation0 [shape = 'u32[]', space=smem, size = 0x4, offset = 0x4, fixed_abs, tag = 'smem constant byte address 0x4 - core index']
  #allocation1 [shape = 'u32[144,128]{1,0:T(1,128)}', space=vmem, size = 0x12000, scoped, tag = 'internal scratch']
  #allocation2 [shape = 'f32[72,2048]{1,0:T(8,128)}', space=vmem, size = 0x90000, scoped, tag = 'scratch operand']
  %s0 = inlined_call_operand.hbm [shape: f32[8,4096], index: 0, kind: input, shape index: {}]
  %s1 = inlined_call_operand.vmem [shape: f32[32,72], index: 1, kind: input, shape index: {}]
  %s2 = inlined_call_operand.vmem [shape: f32[32,1], index: 2, kind: input, shape index: {}]
  %s3 = inlined_call_operand.hbm [shape: f32[32,4096], index: 3, kind: output, shape index: {}]
  %s4 = sld [smem:[#allocation0]]
  $region49: #{tpu_custom_call.1} parent=0
    _
  %s6 = ssub.s32 1, %s4
  %s7 = scalar_select 0, %s6, %s4
  $region1: #{tpu_custom_call.1} parent=0
    #allocation3 [shape = 'u8[131072]{0}', space=vmem, size = 0x20000, scoped, tag = 'input window, operand 0']
    #allocation4 [shape = 's32[2]{0}', space=sflag, size = 0x8, scoped, tag = 'scoped memory for tpu_custom_call.1']
    #allocation5 [shape = 's32[2]{0}', space=sflag, size = 0x8, scoped, tag = 'scoped memory for tpu_custom_call.1']
    #allocation6 [shape = 'u8[524288]{0}', space=vmem, size = 0x80000, scoped, tag = 'output window, operand 0']
    %8 = vsyncpa [#allocation4], 0
    %s9 = scalar_lea.sflag [#allocation4], 1
    %10 = vsyncpa %s9, 0
    %11 = vsyncpa [#allocation5], 0
    %s12 = scalar_lea.sflag [#allocation5], 1
    %13 = vsyncpa %s12, 0
    loop: start=0, step=1, limit=4
    $region2: #{tpu_custom_call.1} parent=1 // loop_pre_header
      _
    $region3: #{tpu_custom_call.1} parent=1 // loop_header
      %s15 = sphi 0, %s19
      %p16 = scmp.ge.s32.totalorder %s15, 4
      %s25 = sphi 0, %s27
      %s28 = sphi 0, %s25
      %s29 = sphi 0, %s28
      %s45 = sphi 0, %s29
      %s49 = sphi 0, %s49
      %s51 = sphi 0, %s49
      %s52 = sphi 0, %s51
      %s66 = sphi 0, %s52
      %s70 = sphi 0, %s70
      %s72 = sphi 0, %s70
      %s73 = sphi 0, %s72
      %s87 = sphi 0, %s73
      %s93 = sphi 0, %s95
      %s96 = sphi 0, %s93
      %s97 = sphi 0, %s96
      %s113 = sphi 0, %s97
    $region4: #{tpu_custom_call.1} parent=1 // loop_header_branch
      %18 = sbr.rel (%p16) target = $region8
    $region5: #{tpu_custom_call.1} parent=1 // loop_body
      %s20 = ssub.s32 %s15, 1
      %s21 = ssub.s32 %s15, 2
      %s22 = sadd.s32 %s15, 1
      %s23 = ssub.s32 %s15, %s22
      %p24 = scmp.eq.s32.totalorder %s23, 0
      %s26 = sadd.s32 %s25, 1
      %s27 = scalar_select %p24, %s25, %s26
      %p30 = pneg %p24
      %p31 = scmp.eq.s32.totalorder %s15, 1
      %p32 = por %p30, %p31
      %p33 = scmp.ne.s32.totalorder %s25, %s28
      %p34 = scmp.eq.s32.totalorder %s15, 0
      %p35 = por %p33, %p34
      %p36 = scmp.ne.s32.totalorder %s25, %s28
      %p37 = scmp.eq.s32.totalorder %s20, 1
      %p38 = por %p36, %p37
      %p39 = scmp.ne.s32.totalorder %s28, %s29
      %p40 = scmp.eq.s32.totalorder %s20, 0
      %p41 = por %p39, %p40
      %p42 = scmp.ne.s32.totalorder %s28, %s29
      %p43 = scmp.eq.s32.totalorder %s21, 1
      %p44 = por %p42, %p43
      %p46 = scmp.ne.s32.totalorder %s29, %s45
      %p47 = scmp.eq.s32.totalorder %s21, 0
      %p48 = por %p46, %p47
      %s50 = sadd.s32 %s49, 1
      %p53 = scmp.eq.s32.totalorder %s15, 1
      %p54 = scmp.ne.s32.totalorder %s49, %s51
      %p55 = scmp.eq.s32.totalorder %s15, 0
      %p56 = por %p54, %p55
      %p57 = scmp.ne.s32.totalorder %s49, %s51
      %p58 = scmp.eq.s32.totalorder %s20, 1
      %p59 = por %p57, %p58
      %p60 = scmp.ne.s32.totalorder %s51, %s52
      %p61 = scmp.eq.s32.totalorder %s20, 0
      %p62 = por %p60, %p61
      %p63 = scmp.ne.s32.totalorder %s51, %s52
      %p64 = scmp.eq.s32.totalorder %s21, 1
      %p65 = por %p63, %p64
      %p67 = scmp.ne.s32.totalorder %s52, %s66
      %p68 = scmp.eq.s32.totalorder %s21, 0
      %p69 = por %p67, %p68
      %s71 = sadd.s32 %s70, 1
      %p74 = scmp.eq.s32.totalorder %s15, 1
      %p75 = scmp.ne.s32.totalorder %s70, %s72
      %p76 = scmp.eq.s32.totalorder %s15, 0
      %p77 = por %p75, %p76
      %p78 = scmp.ne.s32.totalorder %s70, %s72
      %p79 = scmp.eq.s32.totalorder %s20, 1
      %p80 = por %p78, %p79
      %p81 = scmp.ne.s32.totalorder %s72, %s73
      %p82 = scmp.eq.s32.totalorder %s20, 0
      %p83 = por %p81, %p82
      %p84 = scmp.ne.s32.totalorder %s72, %s73
      %p85 = scmp.eq.s32.totalorder %s21, 1
      %p86 = por %p84, %p85
      %p88 = scmp.ne.s32.totalorder %s73, %s87
      %p89 = scmp.eq.s32.totalorder %s21, 0
      %p90 = por %p88, %p89
      %s91 = ssub.s32 %s15, %s22
      %p92 = scmp.eq.s32.totalorder %s91, 0
      %s94 = sadd.s32 %s93, 1
      %s95 = scalar_select %p92, %s93, %s94
      %p98 = pneg %p92
      %p99 = scmp.eq.s32.totalorder %s15, 1
      %p100 = por %p98, %p99
      %p101 = scmp.ne.s32.totalorder %s93, %s96
      %p102 = scmp.eq.s32.totalorder %s15, 0
      %p103 = por %p101, %p102
      %p104 = scmp.ne.s32.totalorder %s93, %s96
      %p105 = scmp.eq.s32.totalorder %s20, 1
      %p106 = por %p104, %p105
      %p107 = scmp.ne.s32.totalorder %s96, %s97
      %p108 = scmp.eq.s32.totalorder %s20, 0
      %p109 = por %p107, %p108
      %p110 = scmp.ne.s32.totalorder %s96, %s97
      %p111 = scmp.eq.s32.totalorder %s21, 1
      %p112 = por %p110, %p111
      %p114 = scmp.ne.s32.totalorder %s97, %s113
      %p115 = scmp.eq.s32.totalorder %s21, 0
      %p116 = por %p114, %p115
      %p117 = scmp.le.s32.totalorder 1, %s15
      %p118 = scmp.lt.s32.totalorder %s15, 3
      %p119 = pnand %p117, %p118
      %p120 = pneg %p119
      // Predicated region
      $region9: #{tpu_custom_call.1} parent=5 // pred_check
        _
      $region10: #{tpu_custom_call.1} parent=5 // pred_check_branch
        %122 = sbr.rel (%p119) target = $region12
      $region11: #{tpu_custom_call.1} parent=5 // pred_region
        %s123 = ssub.s32 %s15, 1
        // Predicated region
        $region13: #{tpu_custom_call.1} parent=11 // pred_check
          %p124 = pneg %p62
        $region14: #{tpu_custom_call.1} parent=11 // pred_check_branch
          %126 = sbr.rel (%p124) target = $region16
        $region15: #{tpu_custom_call.1} parent=11 // pred_region
          _
        $region16: #{tpu_custom_call.1} parent=11 // pred_fallthru
          _
        // Predicated region
        $region17: #{tpu_custom_call.1} parent=11 // pred_check
          %p127 = pneg %p83
        $region18: #{tpu_custom_call.1} parent=11 // pred_check_branch
          %129 = sbr.rel (%p127) target = $region20
        $region19: #{tpu_custom_call.1} parent=11 // pred_region
          _
        $region20: #{tpu_custom_call.1} parent=11 // pred_fallthru
          _
      $region12: #{tpu_custom_call.1} parent=5 // pred_fallthru
        _
      %p130 = scmp.lt.s32.totalorder %s15, 2
      // Predicated region
      $region21: #{tpu_custom_call.1} parent=5 // pred_check
        %p131 = pneg %p130
      $region22: #{tpu_custom_call.1} parent=5 // pred_check_branch
        %133 = sbr.rel (%p131) target = $region24
      $region23: #{tpu_custom_call.1} parent=5 // pred_region
        // Predicated region
        $region25: #{tpu_custom_call.1} parent=23 // pred_check
          %p134 = pneg %p35
        $region26: #{tpu_custom_call.1} parent=23 // pred_check_branch
          %136 = sbr.rel (%p134) target = $region28
        $region27: #{tpu_custom_call.1} parent=23 // pred_region
          %s137 = sand.u32 %s25, 1
          %s138 = scalar_lea.sflag [#allocation4], %s137
          %s139 = sand.u32 %s25, 1
          %s140 = smul.addr %s139, 128
          %s141 = scalar_lea.vmem [#allocation3], %s140
          %s142 = smul.u32 16, %s15
          %s144 = ssub.s32 2048, 2048
          %145 = vsyncadd %s138, %s144
          %s146 = smul.addr %s142, 128
          %s147 = scalar_lea.hbm %s0, %s146
          %s149 = sshll.u32 %s141, 4
          %s150 = int_to_ptr.vmem [resolvable:$true] %s149
          %152 = dma.hbm_to_vmem [thread:$0]  %s147, 2048, %s150, %s138
        $region28: #{tpu_custom_call.1} parent=23 // pred_fallthru
          _
      $region24: #{tpu_custom_call.1} parent=5 // pred_fallthru
        _
      %p153 = scmp.le.s32.totalorder 1, %s15
      %p154 = scmp.lt.s32.totalorder %s15, 3
      %p155 = pnand %p153, %p154
      %p156 = pneg %p155
      // Predicated region
      $region29: #{tpu_custom_call.1} parent=5 // pred_check
        _
      $region30: #{tpu_custom_call.1} parent=5 // pred_check_branch
        %158 = sbr.rel (%p155) target = $region32
      $region31: #{tpu_custom_call.1} parent=5 // pred_region
        %s159 = ssub.s32 %s15, 1
        %s160 = sand.u32 %s28, 1
        %s161 = scalar_lea.sflag [#allocation4], %s160
        %s162 = sand.u32 %s28, 1
        %s163 = smul.addr %s162, 128
        %s164 = scalar_lea.vmem [#allocation3], %s163
        // Predicated region
        $region33: #{tpu_custom_call.1} parent=31 // pred_check
          %p165 = pneg %p41
        $region34: #{tpu_custom_call.1} parent=31 // pred_check_branch
          %167 = sbr.rel (%p165) target = $region36
        $region35: #{tpu_custom_call.1} parent=31 // pred_region
          %168 = dma.done %s161, 2048
        $region36: #{tpu_custom_call.1} parent=31 // pred_fallthru
          _
        %s169 = sand.u32 %s28, 1
        %s170 = scalar_lea.sflag [#allocation4], %s169
        %s171 = sand.u32 %s28, 1
        %s172 = smul.addr %s171, 128
        %s173 = scalar_lea.vmem [#allocation3], %s172
        %p174 = pneg %p41
        %p175 = pneg %p38
        %p176 = pneg %p62
        %p177 = pneg %p59
        %p178 = pneg %p83
        %p179 = pneg %p80
        %p180 = pneg %p109
        %p181 = pneg %p106
        %s182 = sand.u32 %s96, 1
        %s183 = scalar_lea.sflag [#allocation5], %s182
        %s184 = sand.u32 %s96, 1
        %s185 = smul.addr %s184, 512
        %s186 = scalar_lea.vmem [#allocation6], %s185
        %s187 = smul.u32 16, %s20
        %s188 = smul.u32 16, %s20
        %v189 = vld [vmem:[%s164] sm:$0xff]
        %v190 = vld [vmem:[%s164 + $0x8] sm:$0xff]
        %v191 = vld [vmem:[%s164 + $0x10] sm:$0xff]
        %v192 = vld [vmem:[%s164 + $0x18] sm:$0xff]
        %v193 = vld [vmem:[%s164 + $0x20] sm:$0xff]
        %v194 = vld [vmem:[%s164 + $0x28] sm:$0xff]
        %v195 = vld [vmem:[%s164 + $0x30] sm:$0xff]
        %v196 = vld [vmem:[%s164 + $0x38] sm:$0xff]
        %v197 = vld [vmem:[%s164 + $0x40] sm:$0xff]
        %v198 = vld [vmem:[%s164 + $0x48] sm:$0xff]
        %v199 = vld [vmem:[%s164 + $0x50] sm:$0xff]
        %v200 = vld [vmem:[%s164 + $0x58] sm:$0xff]
        %v201 = vld [vmem:[%s164 + $0x60] sm:$0xff]
        %v202 = vld [vmem:[%s164 + $0x68] sm:$0xff]
        %v203 = vld [vmem:[%s164 + $0x70] sm:$0xff]
        %v204 = vld [vmem:[%s164 + $0x78] sm:$0xff]
        %205 = vrot.lane.b32.xlu0 %v189, 33
        %v206 = vpop.permute.xlu0 %205
        %207 = vrot.lane.b32.xlu0 %v190, 33
        %v208 = vpop.permute.xlu0 %207
        %209 = vrot.lane.b32.xlu0 %v191, 33
        %v210 = vpop.permute.xlu0 %209
        %211 = vrot.lane.b32.xlu0 %v192, 33
        %v212 = vpop.permute.xlu0 %211
        %213 = vrot.lane.b32.xlu0 %v193, 33
        %v214 = vpop.permute.xlu0 %213
        %215 = vrot.lane.b32.xlu0 %v194, 33
        %v216 = vpop.permute.xlu0 %215
        %217 = vrot.lane.b32.xlu0 %v195, 33
        %v218 = vpop.permute.xlu0 %217
        %219 = vrot.lane.b32.xlu0 %v196, 33
        %v220 = vpop.permute.xlu0 %219
        %221 = vrot.lane.b32.xlu0 %v197, 33
        %v222 = vpop.permute.xlu0 %221
        %223 = vrot.lane.b32.xlu0 %v198, 33
        %v224 = vpop.permute.xlu0 %223
        %225 = vrot.lane.b32.xlu0 %v199, 33
        %v226 = vpop.permute.xlu0 %225
        %227 = vrot.lane.b32.xlu0 %v200, 33
        %v228 = vpop.permute.xlu0 %227
        %229 = vrot.lane.b32.xlu0 %v201, 33
        %v230 = vpop.permute.xlu0 %229
        %231 = vrot.lane.b32.xlu0 %v202, 33
        %v232 = vpop.permute.xlu0 %231
        %233 = vrot.lane.b32.xlu0 %v203, 33
        %v234 = vpop.permute.xlu0 %233
        %235 = vrot.lane.b32.xlu0 %v204, 33
        %v236 = vpop.permute.xlu0 %235
        %v237 = vlaneseq
        %v238 = vand.u32 %v237, 127
        %vm239 = vcmp.lt.s32.totalorder %v238, 33
        %v240 = vsel %vm239, %v234, %v236
        %v241 = vsel %vm239, %v232, %v234
        %v242 = vsel %vm239, %v230, %v232
        %v243 = vsel %vm239, %v228, %v230
        %v244 = vsel %vm239, %v226, %v228
        %v245 = vsel %vm239, %v224, %v226
        %v246 = vsel %vm239, %v222, %v224
        %v247 = vsel %vm239, %v220, %v222
        %v248 = vsel %vm239, %v218, %v220
        %v249 = vsel %vm239, %v216, %v218
        %v250 = vsel %vm239, %v214, %v216
        %v251 = vsel %vm239, %v212, %v214
        %v252 = vsel %vm239, %v210, %v212
        %v253 = vsel %vm239, %v208, %v210
        %v254 = vsel %vm239, %v206, %v208
        %v255 = vsel %vm239, %v236, %v206
        %256 = vst [vmem:[#allocation2] sm:$0xff] %v255
        %257 = vst [vmem:[#allocation2 + $0x8] sm:$0xff] %v254
        %258 = vst [vmem:[#allocation2 + $0x10] sm:$0xff] %v253
        %259 = vst [vmem:[#allocation2 + $0x18] sm:$0xff] %v252
        %260 = vst [vmem:[#allocation2 + $0x20] sm:$0xff] %v251
        %261 = vst [vmem:[#allocation2 + $0x28] sm:$0xff] %v250
        %262 = vst [vmem:[#allocation2 + $0x30] sm:$0xff] %v249
        %263 = vst [vmem:[#allocation2 + $0x38] sm:$0xff] %v248
        %264 = vst [vmem:[#allocation2 + $0x40] sm:$0xff] %v247
        %265 = vst [vmem:[#allocation2 + $0x48] sm:$0xff] %v246
        %266 = vst [vmem:[#allocation2 + $0x50] sm:$0xff] %v245
        %267 = vst [vmem:[#allocation2 + $0x58] sm:$0xff] %v244
        %268 = vst [vmem:[#allocation2 + $0x60] sm:$0xff] %v243
        %269 = vst [vmem:[#allocation2 + $0x68] sm:$0xff] %v242
        %270 = vst [vmem:[#allocation2 + $0x70] sm:$0xff] %v241
        %271 = vst [vmem:[#allocation2 + $0x78] sm:$0xff] %v240
        %272 = vrot.lane.b32.xlu0 %v189, 32
        %v273 = vpop.permute.xlu0 %272
        %274 = vrot.lane.b32.xlu0 %v190, 32
        %v275 = vpop.permute.xlu0 %274
        %276 = vrot.lane.b32.xlu0 %v191, 32
        %v277 = vpop.permute.xlu0 %276
        %278 = vrot.lane.b32.xlu0 %v192, 32
        %v279 = vpop.permute.xlu0 %278
        %280 = vrot.lane.b32.xlu0 %v193, 32
        %v281 = vpop.permute.xlu0 %280
        %282 = vrot.lane.b32.xlu0 %v194, 32
        %v283 = vpop.permute.xlu0 %282
        %284 = vrot.lane.b32.xlu0 %v195, 32
        %v285 = vpop.permute.xlu0 %284
        %286 = vrot.lane.b32.xlu0 %v196, 32
        %v287 = vpop.permute.xlu0 %286
        %288 = vrot.lane.b32.xlu0 %v197, 32
        %v289 = vpop.permute.xlu0 %288
        %290 = vrot.lane.b32.xlu0 %v198, 32
        %v291 = vpop.permute.xlu0 %290
        %292 = vrot.lane.b32.xlu0 %v199, 32
        %v293 = vpop.permute.xlu0 %292
        %294 = vrot.lane.b32.xlu0 %v200, 32
        %v295 = vpop.permute.xlu0 %294
        %296 = vrot.lane.b32.xlu0 %v201, 32
        %v297 = vpop.permute.xlu0 %296
        %298 = vrot.lane.b32.xlu0 %v202, 32
        %v299 = vpop.permute.xlu0 %298
        %300 = vrot.lane.b32.xlu0 %v203, 32
        %v301 = vpop.permute.xlu0 %300
        %302 = vrot.lane.b32.xlu0 %v204, 32
        %v303 = vpop.permute.xlu0 %302
        %vm304 = vcmp.lt.s32.totalorder %v238, 32
        %v305 = vsel %vm304, %v301, %v303
        %v306 = vsel %vm304, %v299, %v301
        %v307 = vsel %vm304, %v297, %v299
        %v308 = vsel %vm304, %v295, %v297
        %v309 = vsel %vm304, %v293, %v295
        %v310 = vsel %vm304, %v291, %v293
        %v311 = vsel %vm304, %v289, %v291
        %v312 = vsel %vm304, %v287, %v289
        %v313 = vsel %vm304, %v285, %v287
        %v314 = vsel %vm304, %v283, %v285
        %v315 = vsel %vm304, %v281, %v283
        %v316 = vsel %vm304, %v279, %v281
        %v317 = vsel %vm304, %v277, %v279
        %v318 = vsel %vm304, %v275, %v277
        %v319 = vsel %vm304, %v273, %v275
        %v320 = vsel %vm304, %v303, %v273
        %321 = vst [vmem:[#allocation2 + $0x80] sm:$0xff] %v320
        %322 = vst [vmem:[#allocation2 + $0x88] sm:$0xff] %v319
        %323 = vst [vmem:[#allocation2 + $0x90] sm:$0xff] %v318
        %324 = vst [vmem:[#allocation2 + $0x98] sm:$0xff] %v317
        %325 = vst [vmem:[#allocation2 + $0xa0] sm:$0xff] %v316
        %326 = vst [vmem:[#allocation2 + $0xa8] sm:$0xff] %v315
        %327 = vst [vmem:[#allocation2 + $0xb0] sm:$0xff] %v314
        %328 = vst [vmem:[#allocation2 + $0xb8] sm:$0xff] %v313
        %329 = vst [vmem:[#allocation2 + $0xc0] sm:$0xff] %v312
        %330 = vst [vmem:[#allocation2 + $0xc8] sm:$0xff] %v311
        %331 = vst [vmem:[#allocation2 + $0xd0] sm:$0xff] %v310
        %332 = vst [vmem:[#allocation2 + $0xd8] sm:$0xff] %v309
        %333 = vst [vmem:[#allocation2 + $0xe0] sm:$0xff] %v308
        %334 = vst [vmem:[#allocation2 + $0xe8] sm:$0xff] %v307
        %335 = vst [vmem:[#allocation2 + $0xf0] sm:$0xff] %v306
        %336 = vst [vmem:[#allocation2 + $0xf8] sm:$0xff] %v305
        %337 = vrot.lane.b32.xlu0 %v189, 31
        %v338 = vpop.permute.xlu0 %337
        %339 = vrot.lane.b32.xlu0 %v190, 31
        %v340 = vpop.permute.xlu0 %339
        %341 = vrot.lane.b32.xlu0 %v191, 31
        %v342 = vpop.permute.xlu0 %341
        %343 = vrot.lane.b32.xlu0 %v192, 31
        %v344 = vpop.permute.xlu0 %343
        %345 = vrot.lane.b32.xlu0 %v193, 31
        %v346 = vpop.permute.xlu0 %345
        %347 = vrot.lane.b32.xlu0 %v194, 31
        %v348 = vpop.permute.xlu0 %347
        %349 = vrot.lane.b32.xlu0 %v195, 31
        %v350 = vpop.permute.xlu0 %349
        %351 = vrot.lane.b32.xlu0 %v196, 31
        %v352 = vpop.permute.xlu0 %351
        %353 = vrot.lane.b32.xlu0 %v197, 31
        %v354 = vpop.permute.xlu0 %353
        %355 = vrot.lane.b32.xlu0 %v198, 31
        %v356 = vpop.permute.xlu0 %355
        %357 = vrot.lane.b32.xlu0 %v199, 31
        %v358 = vpop.permute.xlu0 %357
        %359 = vrot.lane.b32.xlu0 %v200, 31
        %v360 = vpop.permute.xlu0 %359
        %361 = vrot.lane.b32.xlu0 %v201, 31
        %v362 = vpop.permute.xlu0 %361
        %363 = vrot.lane.b32.xlu0 %v202, 31
        %v364 = vpop.permute.xlu0 %363
        %365 = vrot.lane.b32.xlu0 %v203, 31
        %v366 = vpop.permute.xlu0 %365
        %367 = vrot.lane.b32.xlu0 %v204, 31
        %v368 = vpop.permute.xlu0 %367
        %vm369 = vcmp.lt.s32.totalorder %v238, 31
        %v370 = vsel %vm369, %v366, %v368
        %v371 = vsel %vm369, %v364, %v366
        %v372 = vsel %vm369, %v362, %v364
        %v373 = vsel %vm369, %v360, %v362
        %v374 = vsel %vm369, %v358, %v360
        %v375 = vsel %vm369, %v356, %v358
        %v376 = vsel %vm369, %v354, %v356
        %v377 = vsel %vm369, %v352, %v354
        %v378 = vsel %vm369, %v350, %v352
        %v379 = vsel %vm369, %v348, %v350
        %v380 = vsel %vm369, %v346, %v348
        %v381 = vsel %vm369, %v344, %v346
        %v382 = vsel %vm369, %v342, %v344
        %v383 = vsel %vm369, %v340, %v342
        %v384 = vsel %vm369, %v338, %v340
        %v385 = vsel %vm369, %v368, %v338
        %386 = vst [vmem:[#allocation2 + $0x100] sm:$0xff] %v385
        %387 = vst [vmem:[#allocation2 + $0x108] sm:$0xff] %v384
        %388 = vst [vmem:[#allocation2 + $0x110] sm:$0xff] %v383
        %389 = vst [vmem:[#allocation2 + $0x118] sm:$0xff] %v382
        %390 = vst [vmem:[#allocation2 + $0x120] sm:$0xff] %v381
        %391 = vst [vmem:[#allocation2 + $0x128] sm:$0xff] %v380
        %392 = vst [vmem:[#allocation2 + $0x130] sm:$0xff] %v379
        %393 = vst [vmem:[#allocation2 + $0x138] sm:$0xff] %v378
        %394 = vst [vmem:[#allocation2 + $0x140] sm:$0xff] %v377
        %395 = vst [vmem:[#allocation2 + $0x148] sm:$0xff] %v376
        %396 = vst [vmem:[#allocation2 + $0x150] sm:$0xff] %v375
        %397 = vst [vmem:[#allocation2 + $0x158] sm:$0xff] %v374
        %398 = vst [vmem:[#allocation2 + $0x160] sm:$0xff] %v373
        %399 = vst [vmem:[#allocation2 + $0x168] sm:$0xff] %v372
        %400 = vst [vmem:[#allocation2 + $0x170] sm:$0xff] %v371
        %401 = vst [vmem:[#allocation2 + $0x178] sm:$0xff] %v370
        %402 = vrot.lane.b32.xlu0 %v189, 1
        %v403 = vpop.permute.xlu0 %402
        %404 = vrot.lane.b32.xlu0 %v190, 1
        %v405 = vpop.permute.xlu0 %404
        %406 = vrot.lane.b32.xlu0 %v191, 1
        %v407 = vpop.permute.xlu0 %406
        %408 = vrot.lane.b32.xlu0 %v192, 1
        %v409 = vpop.permute.xlu0 %408
        %410 = vrot.lane.b32.xlu0 %v193, 1
        %v411 = vpop.permute.xlu0 %410
        %412 = vrot.lane.b32.xlu0 %v194, 1
        %v413 = vpop.permute.xlu0 %412
        %414 = vrot.lane.b32.xlu0 %v195, 1
        %v415 = vpop.permute.xlu0 %414
        %416 = vrot.lane.b32.xlu0 %v196, 1
        %v417 = vpop.permute.xlu0 %416
        %418 = vrot.lane.b32.xlu0 %v197, 1
        %v419 = vpop.permute.xlu0 %418
        %420 = vrot.lane.b32.xlu0 %v198, 1
        %v421 = vpop.permute.xlu0 %420
        %422 = vrot.lane.b32.xlu0 %v199, 1
        %v423 = vpop.permute.xlu0 %422
        %424 = vrot.lane.b32.xlu0 %v200, 1
        %v425 = vpop.permute.xlu0 %424
        %426 = vrot.lane.b32.xlu0 %v201, 1
        %v427 = vpop.permute.xlu0 %426
        %428 = vrot.lane.b32.xlu0 %v202, 1
        %v429 = vpop.permute.xlu0 %428
        %430 = vrot.lane.b32.xlu0 %v203, 1
        %v431 = vpop.permute.xlu0 %430
        %432 = vrot.lane.b32.xlu0 %v204, 1
        %v433 = vpop.permute.xlu0 %432
        %vm434 = vcmp.lt.s32.totalorder %v238, 1
        %v435 = vsel %vm434, %v431, %v433
        %v436 = vsel %vm434, %v429, %v431
        %v437 = vsel %vm434, %v427, %v429
        %v438 = vsel %vm434, %v425, %v427
        %v439 = vsel %vm434, %v423, %v425
        %v440 = vsel %vm434, %v421, %v423
        %v441 = vsel %vm434, %v419, %v421
        %v442 = vsel %vm434, %v417, %v419
        %v443 = vsel %vm434, %v415, %v417
        %v444 = vsel %vm434, %v413, %v415
        %v445 = vsel %vm434, %v411, %v413
        %v446 = vsel %vm434, %v409, %v411
        %v447 = vsel %vm434, %v407, %v409
        %v448 = vsel %vm434, %v405, %v407
        %v449 = vsel %vm434, %v403, %v405
        %v450 = vsel %vm434, %v433, %v403
        %451 = vst [vmem:[#allocation2 + $0x180] sm:$0xff] %v450
        %452 = vst [vmem:[#allocation2 + $0x188] sm:$0xff] %v449
        %453 = vst [vmem:[#allocation2 + $0x190] sm:$0xff] %v448
        %454 = vst [vmem:[#allocation2 + $0x198] sm:$0xff] %v447
        %455 = vst [vmem:[#allocation2 + $0x1a0] sm:$0xff] %v446
        %456 = vst [vmem:[#allocation2 + $0x1a8] sm:$0xff] %v445
        %457 = vst [vmem:[#allocation2 + $0x1b0] sm:$0xff] %v444
        %458 = vst [vmem:[#allocation2 + $0x1b8] sm:$0xff] %v443
        %459 = vst [vmem:[#allocation2 + $0x1c0] sm:$0xff] %v442
        %460 = vst [vmem:[#allocation2 + $0x1c8] sm:$0xff] %v441
        %461 = vst [vmem:[#allocation2 + $0x1d0] sm:$0xff] %v440
        %462 = vst [vmem:[#allocation2 + $0x1d8] sm:$0xff] %v439
        %463 = vst [vmem:[#allocation2 + $0x1e0] sm:$0xff] %v438
        %464 = vst [vmem:[#allocation2 + $0x1e8] sm:$0xff] %v437
        %465 = vst [vmem:[#allocation2 + $0x1f0] sm:$0xff] %v436
        %466 = vst [vmem:[#allocation2 + $0x1f8] sm:$0xff] %v435
        %467 = vst [vmem:[#allocation2 + $0x200] sm:$0xff] %v189
        %468 = vst [vmem:[#allocation2 + $0x208] sm:$0xff] %v190
        %469 = vst [vmem:[#allocation2 + $0x210] sm:$0xff] %v191
        %470 = vst [vmem:[#allocation2 + $0x218] sm:$0xff] %v192
        %471 = vst [vmem:[#allocation2 + $0x220] sm:$0xff] %v193
        %472 = vst [vmem:[#allocation2 + $0x228] sm:$0xff] %v194
        %473 = vst [vmem:[#allocation2 + $0x230] sm:$0xff] %v195
        %474 = vst [vmem:[#allocation2 + $0x238] sm:$0xff] %v196
        %475 = vst [vmem:[#allocation2 + $0x240] sm:$0xff] %v197
        %476 = vst [vmem:[#allocation2 + $0x248] sm:$0xff] %v198
        %477 = vst [vmem:[#allocation2 + $0x250] sm:$0xff] %v199
        %478 = vst [vmem:[#allocation2 + $0x258] sm:$0xff] %v200
        %479 = vst [vmem:[#allocation2 + $0x260] sm:$0xff] %v201
        %480 = vst [vmem:[#allocation2 + $0x268] sm:$0xff] %v202
        %481 = vst [vmem:[#allocation2 + $0x270] sm:$0xff] %v203
        %482 = vst [vmem:[#allocation2 + $0x278] sm:$0xff] %v204
        %483 = vrot.lane.b32.xlu0 %v189, 127
        %v484 = vpop.permute.xlu0 %483
        %485 = vrot.lane.b32.xlu0 %v190, 127
        %v486 = vpop.permute.xlu0 %485
        %487 = vrot.lane.b32.xlu0 %v191, 127
        %v488 = vpop.permute.xlu0 %487
        %489 = vrot.lane.b32.xlu0 %v192, 127
        %v490 = vpop.permute.xlu0 %489
        %491 = vrot.lane.b32.xlu0 %v193, 127
        %v492 = vpop.permute.xlu0 %491
        %493 = vrot.lane.b32.xlu0 %v194, 127
        %v494 = vpop.permute.xlu0 %493
        %495 = vrot.lane.b32.xlu0 %v195, 127
        %v496 = vpop.permute.xlu0 %495
        %497 = vrot.lane.b32.xlu0 %v196, 127
        %v498 = vpop.permute.xlu0 %497
        %499 = vrot.lane.b32.xlu0 %v197, 127
        %v500 = vpop.permute.xlu0 %499
        %501 = vrot.lane.b32.xlu0 %v198, 127
        %v502 = vpop.permute.xlu0 %501
        %503 = vrot.lane.b32.xlu0 %v199, 127
        %v504 = vpop.permute.xlu0 %503
        %505 = vrot.lane.b32.xlu0 %v200, 127
        %v506 = vpop.permute.xlu0 %505
        %507 = vrot.lane.b32.xlu0 %v201, 127
        %v508 = vpop.permute.xlu0 %507
        %509 = vrot.lane.b32.xlu0 %v202, 127
        %v510 = vpop.permute.xlu0 %509
        %511 = vrot.lane.b32.xlu0 %v203, 127
        %v512 = vpop.permute.xlu0 %511
        %513 = vrot.lane.b32.xlu0 %v204, 127
        %v514 = vpop.permute.xlu0 %513
        %vm515 = vcmp.lt.s32.totalorder %v238, 127
        %v516 = vsel %vm515, %v512, %v514
        %v517 = vsel %vm515, %v510, %v512
        %v518 = vsel %vm515, %v508, %v510
        %v519 = vsel %vm515, %v506, %v508
        %v520 = vsel %vm515, %v504, %v506
        %v521 = vsel %vm515, %v502, %v504
        %v522 = vsel %vm515, %v500, %v502
        %v523 = vsel %vm515, %v498, %v500
        %v524 = vsel %vm515, %v496, %v498
        %v525 = vsel %vm515, %v494, %v496
        %v526 = vsel %vm515, %v492, %v494
        %v527 = vsel %vm515, %v490, %v492
        %v528 = vsel %vm515, %v488, %v490
        %v529 = vsel %vm515, %v486, %v488
        %v530 = vsel %vm515, %v484, %v486
        %v531 = vsel %vm515, %v514, %v484
        %532 = vst [vmem:[#allocation2 + $0x280] sm:$0xff] %v530
        %533 = vst [vmem:[#allocation2 + $0x288] sm:$0xff] %v529
        %534 = vst [vmem:[#allocation2 + $0x290] sm:$0xff] %v528
        %535 = vst [vmem:[#allocation2 + $0x298] sm:$0xff] %v527
        %536 = vst [vmem:[#allocation2 + $0x2a0] sm:$0xff] %v526
        %537 = vst [vmem:[#allocation2 + $0x2a8] sm:$0xff] %v525
        %538 = vst [vmem:[#allocation2 + $0x2b0] sm:$0xff] %v524
        %539 = vst [vmem:[#allocation2 + $0x2b8] sm:$0xff] %v523
        %540 = vst [vmem:[#allocation2 + $0x2c0] sm:$0xff] %v522
        %541 = vst [vmem:[#allocation2 + $0x2c8] sm:$0xff] %v521
        %542 = vst [vmem:[#allocation2 + $0x2d0] sm:$0xff] %v520
        %543 = vst [vmem:[#allocation2 + $0x2d8] sm:$0xff] %v519
        %544 = vst [vmem:[#allocation2 + $0x2e0] sm:$0xff] %v518
        %545 = vst [vmem:[#allocation2 + $0x2e8] sm:$0xff] %v517
        %546 = vst [vmem:[#allocation2 + $0x2f0] sm:$0xff] %v516
        %547 = vst [vmem:[#allocation2 + $0x2f8] sm:$0xff] %v531
        %548 = vrot.lane.b32.xlu0 %v189, 97
        %v549 = vpop.permute.xlu0 %548
        %550 = vrot.lane.b32.xlu0 %v190, 97
        %v551 = vpop.permute.xlu0 %550
        %552 = vrot.lane.b32.xlu0 %v191, 97
        %v553 = vpop.permute.xlu0 %552
        %554 = vrot.lane.b32.xlu0 %v192, 97
        %v555 = vpop.permute.xlu0 %554
        %556 = vrot.lane.b32.xlu0 %v193, 97
        %v557 = vpop.permute.xlu0 %556
        %558 = vrot.lane.b32.xlu0 %v194, 97
        %v559 = vpop.permute.xlu0 %558
        %560 = vrot.lane.b32.xlu0 %v195, 97
        %v561 = vpop.permute.xlu0 %560
        %562 = vrot.lane.b32.xlu0 %v196, 97
        %v563 = vpop.permute.xlu0 %562
        %564 = vrot.lane.b32.xlu0 %v197, 97
        %v565 = vpop.permute.xlu0 %564
        %566 = vrot.lane.b32.xlu0 %v198, 97
        %v567 = vpop.permute.xlu0 %566
        %568 = vrot.lane.b32.xlu0 %v199, 97
        %v569 = vpop.permute.xlu0 %568
        %570 = vrot.lane.b32.xlu0 %v200, 97
        %v571 = vpop.permute.xlu0 %570
        %572 = vrot.lane.b32.xlu0 %v201, 97
        %v573 = vpop.permute.xlu0 %572
        %574 = vrot.lane.b32.xlu0 %v202, 97
        %v575 = vpop.permute.xlu0 %574
        %576 = vrot.lane.b32.xlu0 %v203, 97
        %v577 = vpop.permute.xlu0 %576
        %578 = vrot.lane.b32.xlu0 %v204, 97
        %v579 = vpop.permute.xlu0 %578
        %vm580 = vcmp.lt.s32.totalorder %v238, 97
        %v581 = vsel %vm580, %v577, %v579
        %v582 = vsel %vm580, %v575, %v577
        %v583 = vsel %vm580, %v573, %v575
        %v584 = vsel %vm580, %v571, %v573
        %v585 = vsel %vm580, %v569, %v571
        %v586 = vsel %vm580, %v567, %v569
        %v587 = vsel %vm580, %v565, %v567
        %v588 = vsel %vm580, %v563, %v565
        %v589 = vsel %vm580, %v561, %v563
        %v590 = vsel %vm580, %v559, %v561
        %v591 = vsel %vm580, %v557, %v559
        %v592 = vsel %vm580, %v555, %v557
        %v593 = vsel %vm580, %v553, %v555
        %v594 = vsel %vm580, %v551, %v553
        %v595 = vsel %vm580, %v549, %v551
        %v596 = vsel %vm580, %v579, %v549
        %597 = vst [vmem:[#allocation2 + $0x300] sm:$0xff] %v595
        %598 = vst [vmem:[#allocation2 + $0x308] sm:$0xff] %v594
        %599 = vst [vmem:[#allocation2 + $0x310] sm:$0xff] %v593
        %600 = vst [vmem:[#allocation2 + $0x318] sm:$0xff] %v592
        %601 = vst [vmem:[#allocation2 + $0x320] sm:$0xff] %v591
        %602 = vst [vmem:[#allocation2 + $0x328] sm:$0xff] %v590
        %603 = vst [vmem:[#allocation2 + $0x330] sm:$0xff] %v589
        %604 = vst [vmem:[#allocation2 + $0x338] sm:$0xff] %v588
        %605 = vst [vmem:[#allocation2 + $0x340] sm:$0xff] %v587
        %606 = vst [vmem:[#allocation2 + $0x348] sm:$0xff] %v586
        %607 = vst [vmem:[#allocation2 + $0x350] sm:$0xff] %v585
        %608 = vst [vmem:[#allocation2 + $0x358] sm:$0xff] %v584
        %609 = vst [vmem:[#allocation2 + $0x360] sm:$0xff] %v583
        %610 = vst [vmem:[#allocation2 + $0x368] sm:$0xff] %v582
        %611 = vst [vmem:[#allocation2 + $0x370] sm:$0xff] %v581
        %612 = vst [vmem:[#allocation2 + $0x378] sm:$0xff] %v596
        %613 = vrot.lane.b32.xlu0 %v189, 96
        %v614 = vpop.permute.xlu0 %613
        %615 = vrot.lane.b32.xlu0 %v190, 96
        %v616 = vpop.permute.xlu0 %615
        %617 = vrot.lane.b32.xlu0 %v191, 96
        %v618 = vpop.permute.xlu0 %617
        %619 = vrot.lane.b32.xlu0 %v192, 96
        %v620 = vpop.permute.xlu0 %619
        %621 = vrot.lane.b32.xlu0 %v193, 96
        %v622 = vpop.permute.xlu0 %621
        %623 = vrot.lane.b32.xlu0 %v194, 96
        %v624 = vpop.permute.xlu0 %623
        %625 = vrot.lane.b32.xlu0 %v195, 96
        %v626 = vpop.permute.xlu0 %625
        %627 = vrot.lane.b32.xlu0 %v196, 96
        %v628 = vpop.permute.xlu0 %627
        %629 = vrot.lane.b32.xlu0 %v197, 96
        %v630 = vpop.permute.xlu0 %629
        %631 = vrot.lane.b32.xlu0 %v198, 96
        %v632 = vpop.permute.xlu0 %631
        %633 = vrot.lane.b32.xlu0 %v199, 96
        %v634 = vpop.permute.xlu0 %633
        %635 = vrot.lane.b32.xlu0 %v200, 96
        %v636 = vpop.permute.xlu0 %635
        %637 = vrot.lane.b32.xlu0 %v201, 96
        %v638 = vpop.permute.xlu0 %637
        %639 = vrot.lane.b32.xlu0 %v202, 96
        %v640 = vpop.permute.xlu0 %639
        %641 = vrot.lane.b32.xlu0 %v203, 96
        %v642 = vpop.permute.xlu0 %641
        %643 = vrot.lane.b32.xlu0 %v204, 96
        %v644 = vpop.permute.xlu0 %643
        %vm645 = vcmp.lt.s32.totalorder %v238, 96
        %v646 = vsel %vm645, %v642, %v644
        %v647 = vsel %vm645, %v640, %v642
        %v648 = vsel %vm645, %v638, %v640
        %v649 = vsel %vm645, %v636, %v638
        %v650 = vsel %vm645, %v634, %v636
        %v651 = vsel %vm645, %v632, %v634
        %v652 = vsel %vm645, %v630, %v632
        %v653 = vsel %vm645, %v628, %v630
        %v654 = vsel %vm645, %v626, %v628
        %v655 = vsel %vm645, %v624, %v626
        %v656 = vsel %vm645, %v622, %v624
        %v657 = vsel %vm645, %v620, %v622
        %v658 = vsel %vm645, %v618, %v620
        %v659 = vsel %vm645, %v616, %v618
        %v660 = vsel %vm645, %v614, %v616
        %v661 = vsel %vm645, %v644, %v614
        %662 = vst [vmem:[#allocation2 + $0x380] sm:$0xff] %v660
        %663 = vst [vmem:[#allocation2 + $0x388] sm:$0xff] %v659
        %664 = vst [vmem:[#allocation2 + $0x390] sm:$0xff] %v658
        %665 = vst [vmem:[#allocation2 + $0x398] sm:$0xff] %v657
        %666 = vst [vmem:[#allocation2 + $0x3a0] sm:$0xff] %v656
        %667 = vst [vmem:[#allocation2 + $0x3a8] sm:$0xff] %v655
        %668 = vst [vmem:[#allocation2 + $0x3b0] sm:$0xff] %v654
        %669 = vst [vmem:[#allocation2 + $0x3b8] sm:$0xff] %v653
        %670 = vst [vmem:[#allocation2 + $0x3c0] sm:$0xff] %v652
        %671 = vst [vmem:[#allocation2 + $0x3c8] sm:$0xff] %v651
        %672 = vst [vmem:[#allocation2 + $0x3d0] sm:$0xff] %v650
        %673 = vst [vmem:[#allocation2 + $0x3d8] sm:$0xff] %v649
        %674 = vst [vmem:[#allocation2 + $0x3e0] sm:$0xff] %v648
        %675 = vst [vmem:[#allocation2 + $0x3e8] sm:$0xff] %v647
        %676 = vst [vmem:[#allocation2 + $0x3f0] sm:$0xff] %v646
        %677 = vst [vmem:[#allocation2 + $0x3f8] sm:$0xff] %v661
        %678 = vrot.lane.b32.xlu0 %v189, 95
        %v679 = vpop.permute.xlu0 %678
        %680 = vrot.lane.b32.xlu0 %v190, 95
        %v681 = vpop.permute.xlu0 %680
        %682 = vrot.lane.b32.xlu0 %v191, 95
        %v683 = vpop.permute.xlu0 %682
        %684 = vrot.lane.b32.xlu0 %v192, 95
        %v685 = vpop.permute.xlu0 %684
        %686 = vrot.lane.b32.xlu0 %v193, 95
        %v687 = vpop.permute.xlu0 %686
        %688 = vrot.lane.b32.xlu0 %v194, 95
        %v689 = vpop.permute.xlu0 %688
        %690 = vrot.lane.b32.xlu0 %v195, 95
        %v691 = vpop.permute.xlu0 %690
        %692 = vrot.lane.b32.xlu0 %v196, 95
        %v693 = vpop.permute.xlu0 %692
        %694 = vrot.lane.b32.xlu0 %v197, 95
        %v695 = vpop.permute.xlu0 %694
        %696 = vrot.lane.b32.xlu0 %v198, 95
        %v697 = vpop.permute.xlu0 %696
        %698 = vrot.lane.b32.xlu0 %v199, 95
        %v699 = vpop.permute.xlu0 %698
        %700 = vrot.lane.b32.xlu0 %v200, 95
        %v701 = vpop.permute.xlu0 %700
        %702 = vrot.lane.b32.xlu0 %v201, 95
        %v703 = vpop.permute.xlu0 %702
        %704 = vrot.lane.b32.xlu0 %v202, 95
        %v705 = vpop.permute.xlu0 %704
        %706 = vrot.lane.b32.xlu0 %v203, 95
        %v707 = vpop.permute.xlu0 %706
        %708 = vrot.lane.b32.xlu0 %v204, 95
        %v709 = vpop.permute.xlu0 %708
        %vm710 = vcmp.lt.s32.totalorder %v238, 95
        %v711 = vsel %vm710, %v707, %v709
        %v712 = vsel %vm710, %v705, %v707
        %v713 = vsel %vm710, %v703, %v705
        %v714 = vsel %vm710, %v701, %v703
        %v715 = vsel %vm710, %v699, %v701
        %v716 = vsel %vm710, %v697, %v699
        %v717 = vsel %vm710, %v695, %v697
        %v718 = vsel %vm710, %v693, %v695
        %v719 = vsel %vm710, %v691, %v693
        %v720 = vsel %vm710, %v689, %v691
        %v721 = vsel %vm710, %v687, %v689
        %v722 = vsel %vm710, %v685, %v687
        %v723 = vsel %vm710, %v683, %v685
        %v724 = vsel %vm710, %v681, %v683
        %v725 = vsel %vm710, %v679, %v681
        %v726 = vsel %vm710, %v709, %v679
        %727 = vst [vmem:[#allocation2 + $0x400] sm:$0xff] %v725
        %728 = vst [vmem:[#allocation2 + $0x408] sm:$0xff] %v724
        %729 = vst [vmem:[#allocation2 + $0x410] sm:$0xff] %v723
        %730 = vst [vmem:[#allocation2 + $0x418] sm:$0xff] %v722
        %731 = vst [vmem:[#allocation2 + $0x420] sm:$0xff] %v721
        %732 = vst [vmem:[#allocation2 + $0x428] sm:$0xff] %v720
        %733 = vst [vmem:[#allocation2 + $0x430] sm:$0xff] %v719
        %734 = vst [vmem:[#allocation2 + $0x438] sm:$0xff] %v718
        %735 = vst [vmem:[#allocation2 + $0x440] sm:$0xff] %v717
        %736 = vst [vmem:[#allocation2 + $0x448] sm:$0xff] %v716
        %737 = vst [vmem:[#allocation2 + $0x450] sm:$0xff] %v715
        %738 = vst [vmem:[#allocation2 + $0x458] sm:$0xff] %v714
        %739 = vst [vmem:[#allocation2 + $0x460] sm:$0xff] %v713
        %740 = vst [vmem:[#allocation2 + $0x468] sm:$0xff] %v712
        %741 = vst [vmem:[#allocation2 + $0x470] sm:$0xff] %v711
        %742 = vst [vmem:[#allocation2 + $0x478] sm:$0xff] %v726
        %v743 = vld [vmem:[%s1] sm:$0xff]
        %v744 = vld [vmem:[%s1 + $0x8] sm:$0xff]
        %v745 = vld [vmem:[%s1 + $0x10] sm:$0xff]
        %v746 = vld [vmem:[%s1 + $0x18] sm:$0xff]
        %v747 = vld [vmem:[#allocation2] sm:$0xff]
        %v748 = vld [vmem:[#allocation2 + $0x8] sm:$0xff]
        %v749 = vld [vmem:[#allocation2 + $0x10] sm:$0xff]
        %v750 = vld [vmem:[#allocation2 + $0x18] sm:$0xff]
        %v751 = vld [vmem:[#allocation2 + $0x20] sm:$0xff]
        %v752 = vld [vmem:[#allocation2 + $0x28] sm:$0xff]
        %v753 = vld [vmem:[#allocation2 + $0x30] sm:$0xff]
        %v754 = vld [vmem:[#allocation2 + $0x38] sm:$0xff]
        %v755 = vld [vmem:[#allocation2 + $0x40] sm:$0xff]
        %v756 = vld [vmem:[#allocation2 + $0x48] sm:$0xff]
        %v757 = vld [vmem:[#allocation2 + $0x50] sm:$0xff]
        %v758 = vld [vmem:[#allocation2 + $0x58] sm:$0xff]
        %v759 = vld [vmem:[#allocation2 + $0x60] sm:$0xff]
        %v760 = vld [vmem:[#allocation2 + $0x68] sm:$0xff]
        %v761 = vld [vmem:[#allocation2 + $0x70] sm:$0xff]
        %v762 = vld [vmem:[#allocation2 + $0x78] sm:$0xff]
        %v763 = vld [vmem:[#allocation2 + $0x80] sm:$0xff]
        %v764 = vld [vmem:[#allocation2 + $0x88] sm:$0xff]
        %v765 = vld [vmem:[#allocation2 + $0x90] sm:$0xff]
        %v766 = vld [vmem:[#allocation2 + $0x98] sm:$0xff]
        %v767 = vld [vmem:[#allocation2 + $0xa0] sm:$0xff]
        %v768 = vld [vmem:[#allocation2 + $0xa8] sm:$0xff]
        %v769 = vld [vmem:[#allocation2 + $0xb0] sm:$0xff]
        %v770 = vld [vmem:[#allocation2 + $0xb8] sm:$0xff]
        %v771 = vld [vmem:[#allocation2 + $0xc0] sm:$0xff]
        %v772 = vld [vmem:[#allocation2 + $0xc8] sm:$0xff]
        %v773 = vld [vmem:[#allocation2 + $0xd0] sm:$0xff]
        %v774 = vld [vmem:[#allocation2 + $0xd8] sm:$0xff]
        %v775 = vld [vmem:[#allocation2 + $0xe0] sm:$0xff]
        %v776 = vld [vmem:[#allocation2 + $0xe8] sm:$0xff]
        %v777 = vld [vmem:[#allocation2 + $0xf0] sm:$0xff]
        %v778 = vld [vmem:[#allocation2 + $0xf8] sm:$0xff]
        %v779 = vld [vmem:[#allocation2 + $0x100] sm:$0xff]
        %v780 = vld [vmem:[#allocation2 + $0x108] sm:$0xff]
        %v781 = vld [vmem:[#allocation2 + $0x110] sm:$0xff]
        %v782 = vld [vmem:[#allocation2 + $0x118] sm:$0xff]
        %v783 = vld [vmem:[#allocation2 + $0x120] sm:$0xff]
        %v784 = vld [vmem:[#allocation2 + $0x128] sm:$0xff]
        %v785 = vld [vmem:[#allocation2 + $0x130] sm:$0xff]
        %v786 = vld [vmem:[#allocation2 + $0x138] sm:$0xff]
        %v787 = vld [vmem:[#allocation2 + $0x140] sm:$0xff]
        %v788 = vld [vmem:[#allocation2 + $0x148] sm:$0xff]
        %v789 = vld [vmem:[#allocation2 + $0x150] sm:$0xff]
        %v790 = vld [vmem:[#allocation2 + $0x158] sm:$0xff]
        %v791 = vld [vmem:[#allocation2 + $0x160] sm:$0xff]
        %v792 = vld [vmem:[#allocation2 + $0x168] sm:$0xff]
        %v793 = vld [vmem:[#allocation2 + $0x170] sm:$0xff]
        %v794 = vld [vmem:[#allocation2 + $0x178] sm:$0xff]
        %v795 = vld [vmem:[#allocation2 + $0x180] sm:$0xff]
        %v796 = vld [vmem:[#allocation2 + $0x188] sm:$0xff]
        %v797 = vld [vmem:[#allocation2 + $0x190] sm:$0xff]
        %v798 = vld [vmem:[#allocation2 + $0x198] sm:$0xff]
        %v799 = vld [vmem:[#allocation2 + $0x1a0] sm:$0xff]
        %v800 = vld [vmem:[#allocation2 + $0x1a8] sm:$0xff]
        %v801 = vld [vmem:[#allocation2 + $0x1b0] sm:$0xff]
        %v802 = vld [vmem:[#allocation2 + $0x1b8] sm:$0xff]
        %v803 = vld [vmem:[#allocation2 + $0x1c0] sm:$0xff]
        %v804 = vld [vmem:[#allocation2 + $0x1c8] sm:$0xff]
        %v805 = vld [vmem:[#allocation2 + $0x1d0] sm:$0xff]
        %v806 = vld [vmem:[#allocation2 + $0x1d8] sm:$0xff]
        %v807 = vld [vmem:[#allocation2 + $0x1e0] sm:$0xff]
        %v808 = vld [vmem:[#allocation2 + $0x1e8] sm:$0xff]
        %v809 = vld [vmem:[#allocation2 + $0x1f0] sm:$0xff]
        %v810 = vld [vmem:[#allocation2 + $0x1f8] sm:$0xff]
        %v811 = vld [vmem:[#allocation2 + $0x200] sm:$0xff]
        %v812 = vld [vmem:[#allocation2 + $0x208] sm:$0xff]
        %v813 = vld [vmem:[#allocation2 + $0x210] sm:$0xff]
        %v814 = vld [vmem:[#allocation2 + $0x218] sm:$0xff]
        %v815 = vld [vmem:[#allocation2 + $0x220] sm:$0xff]
        %v816 = vld [vmem:[#allocation2 + $0x228] sm:$0xff]
        %v817 = vld [vmem:[#allocation2 + $0x230] sm:$0xff]
        %v818 = vld [vmem:[#allocation2 + $0x238] sm:$0xff]
        %v819 = vld [vmem:[#allocation2 + $0x240] sm:$0xff]
        %v820 = vld [vmem:[#allocation2 + $0x248] sm:$0xff]
        %v821 = vld [vmem:[#allocation2 + $0x250] sm:$0xff]
        %v822 = vld [vmem:[#allocation2 + $0x258] sm:$0xff]
        %v823 = vld [vmem:[#allocation2 + $0x260] sm:$0xff]
        %v824 = vld [vmem:[#allocation2 + $0x268] sm:$0xff]
        %v825 = vld [vmem:[#allocation2 + $0x270] sm:$0xff]
        %v826 = vld [vmem:[#allocation2 + $0x278] sm:$0xff]
        %v827 = vld [vmem:[#allocation2 + $0x280] sm:$0xff]
        %v828 = vld [vmem:[#allocation2 + $0x288] sm:$0xff]
        %v829 = vld [vmem:[#allocation2 + $0x290] sm:$0xff]
        %v830 = vld [vmem:[#allocation2 + $0x298] sm:$0xff]
        %v831 = vld [vmem:[#allocation2 + $0x2a0] sm:$0xff]
        %v832 = vld [vmem:[#allocation2 + $0x2a8] sm:$0xff]
        %v833 = vld [vmem:[#allocation2 + $0x2b0] sm:$0xff]
        %v834 = vld [vmem:[#allocation2 + $0x2b8] sm:$0xff]
        %v835 = vld [vmem:[#allocation2 + $0x2c0] sm:$0xff]
        %v836 = vld [vmem:[#allocation2 + $0x2c8] sm:$0xff]
        %v837 = vld [vmem:[#allocation2 + $0x2d0] sm:$0xff]
        %v838 = vld [vmem:[#allocation2 + $0x2d8] sm:$0xff]
        %v839 = vld [vmem:[#allocation2 + $0x2e0] sm:$0xff]
        %v840 = vld [vmem:[#allocation2 + $0x2e8] sm:$0xff]
        %v841 = vld [vmem:[#allocation2 + $0x2f0] sm:$0xff]
        %v842 = vld [vmem:[#allocation2 + $0x2f8] sm:$0xff]
        %v843 = vld [vmem:[#allocation2 + $0x300] sm:$0xff]
        %v844 = vld [vmem:[#allocation2 + $0x308] sm:$0xff]
        %v845 = vld [vmem:[#allocation2 + $0x310] sm:$0xff]
        %v846 = vld [vmem:[#allocation2 + $0x318] sm:$0xff]
        %v847 = vld [vmem:[#allocation2 + $0x320] sm:$0xff]
        %v848 = vld [vmem:[#allocation2 + $0x328] sm:$0xff]
        %v849 = vld [vmem:[#allocation2 + $0x330] sm:$0xff]
        %v850 = vld [vmem:[#allocation2 + $0x338] sm:$0xff]
        %v851 = vld [vmem:[#allocation2 + $0x340] sm:$0xff]
        %v852 = vld [vmem:[#allocation2 + $0x348] sm:$0xff]
        %v853 = vld [vmem:[#allocation2 + $0x350] sm:$0xff]
        %v854 = vld [vmem:[#allocation2 + $0x358] sm:$0xff]
        %v855 = vld [vmem:[#allocation2 + $0x360] sm:$0xff]
        %v856 = vld [vmem:[#allocation2 + $0x368] sm:$0xff]
        %v857 = vld [vmem:[#allocation2 + $0x370] sm:$0xff]
        %v858 = vld [vmem:[#allocation2 + $0x378] sm:$0xff]
        %v859 = vld [vmem:[#allocation2 + $0x380] sm:$0xff]
        %v860 = vld [vmem:[#allocation2 + $0x388] sm:$0xff]
        %v861 = vld [vmem:[#allocation2 + $0x390] sm:$0xff]
        %v862 = vld [vmem:[#allocation2 + $0x398] sm:$0xff]
        %v863 = vld [vmem:[#allocation2 + $0x3a0] sm:$0xff]
        %v864 = vld [vmem:[#allocation2 + $0x3a8] sm:$0xff]
        %v865 = vld [vmem:[#allocation2 + $0x3b0] sm:$0xff]
        %v866 = vld [vmem:[#allocation2 + $0x3b8] sm:$0xff]
        %v867 = vld [vmem:[#allocation2 + $0x3c0] sm:$0xff]
        %v868 = vld [vmem:[#allocation2 + $0x3c8] sm:$0xff]
        %v869 = vld [vmem:[#allocation2 + $0x3d0] sm:$0xff]
        %v870 = vld [vmem:[#allocation2 + $0x3d8] sm:$0xff]
        %v871 = vld [vmem:[#allocation2 + $0x3e0] sm:$0xff]
        %v872 = vld [vmem:[#allocation2 + $0x3e8] sm:$0xff]
        %v873 = vld [vmem:[#allocation2 + $0x3f0] sm:$0xff]
        %v874 = vld [vmem:[#allocation2 + $0x3f8] sm:$0xff]
        %v875 = vld [vmem:[#allocation2 + $0x400] sm:$0xff]
        %v876 = vld [vmem:[#allocation2 + $0x408] sm:$0xff]
        %v877 = vld [vmem:[#allocation2 + $0x410] sm:$0xff]
        %v878 = vld [vmem:[#allocation2 + $0x418] sm:$0xff]
        %v879 = vld [vmem:[#allocation2 + $0x420] sm:$0xff]
        %v880 = vld [vmem:[#allocation2 + $0x428] sm:$0xff]
        %v881 = vld [vmem:[#allocation2 + $0x430] sm:$0xff]
        %v882 = vld [vmem:[#allocation2 + $0x438] sm:$0xff]
        %v883 = vld [vmem:[#allocation2 + $0x440] sm:$0xff]
        %v884 = vld [vmem:[#allocation2 + $0x448] sm:$0xff]
        %v885 = vld [vmem:[#allocation2 + $0x450] sm:$0xff]
        %v886 = vld [vmem:[#allocation2 + $0x458] sm:$0xff]
        %v887 = vld [vmem:[#allocation2 + $0x460] sm:$0xff]
        %v888 = vld [vmem:[#allocation2 + $0x468] sm:$0xff]
        %v889 = vld [vmem:[#allocation2 + $0x470] sm:$0xff]
        %v890 = vld [vmem:[#allocation2 + $0x478] sm:$0xff]
        %v891 = vld [vmem:[%s2] sm:$0xff]
        %v892 = vld [vmem:[%s2 + $0x8] sm:$0xff]
        %v893 = vld [vmem:[%s2 + $0x10] sm:$0xff]
        %v894 = vld [vmem:[%s2 + $0x18] sm:$0xff]
        %896 = vset.pattern.permute.xlu0 0
        %897 = vperm.xlu0 %896, %v891
        %v898 = vpop.permute.xlu0 %897
        %901 = vset.pattern.permute.xlu0 0
        %902 = vperm.xlu0 %901, %v892
        %v903 = vpop.permute.xlu0 %902
        %906 = vset.pattern.permute.xlu0 0
        %907 = vperm.xlu0 %906, %v893
        %v908 = vpop.permute.xlu0 %907
        %911 = vset.pattern.permute.xlu0 0
        %912 = vperm.xlu0 %911, %v894
        %v913 = vpop.permute.xlu0 %912
        %vm915 = vcmask 588800
        %v917 = vsel %vm915, %v743, 0
        %v920 = vsel %vm915, %v744, 0
        %v923 = vsel %vm915, %v745, 0
        %v926 = vsel %vm915, %v746, 0
        %928 = vmatprep.subr.mxu0 %v748
        %929 = vmatpush1.msra.mxu0 %v747
        %930 = vmatprep.subr.mxu0 %v764
        %931 = vmatpush1.msra.mxu0 %v763
        %932 = vmatprep.subr.mxu0 %v780
        %933 = vmatpush1.msra.mxu0 %v779
        %934 = vmatprep.subr.mxu0 %v796
        %935 = vmatpush1.msra.mxu0 %v795
        %936 = vmatprep.subr.mxu0 %v812
        %937 = vmatpush1.msra.mxu0 %v811
        %938 = vmatprep.subr.mxu0 %v828
        %939 = vmatpush1.msra.mxu0 %v827
        %940 = vmatprep.subr.mxu0 %v844
        %941 = vmatpush1.msra.mxu0 %v843
        %942 = vmatprep.subr.mxu0 %v860
        %943 = vmatpush1.msra.mxu0 %v859
        %944 = vmatprep.subr.mxu0 %v876
        %945 = vmatpush1.msra.mxu0 %v875
        %946 = vmatprep.subr.mxu0 0.0
        %947 = vmatpush1.msra.mxu0 0.0
        %948 = vmatprep.subr.mxu0 0.0
        %949 = vmatpush1.msra.mxu0 0.0
        %950 = vmatprep.subr.mxu0 0.0
        %951 = vmatpush1.msra.mxu0 0.0
        %952 = vmatprep.subr.mxu0 0.0
        %953 = vmatpush1.msra.mxu0 0.0
        %954 = vmatprep.subr.mxu0 0.0
        %955 = vmatpush1.msra.mxu0 0.0
        %956 = vmatprep.subr.mxu0 0.0
        %957 = vmatpush1.msra.mxu0 0.0
        %958 = vmatprep.subr.mxu0 0.0
        %959 = vmatpush1.msra.mxu0 0.0
        %960 = vmatprep.subr.mxu0 0.0
        %961 = vmatpush1.msra.mxu0 0.0
        %962 = vmatprep.subr.mxu0 0.0
        %963 = vmatpush1.msra.mxu0 0.0
        %964 = vmatprep.subr.mxu0 0.0
        %965 = vmatpush1.msra.mxu0 0.0
        %966 = vmatprep.subr.mxu0 0.0
        %967 = vmatpush1.msra.mxu0 0.0
        %968 = vmatprep.subr.mxu0 0.0
        %969 = vmatpush1.msra.mxu0 0.0
        %970 = vmatprep.subr.mxu0 0.0
        %971 = vmatpush1.msra.mxu0 0.0
        %972 = vmatprep.subr.mxu0 0.0
        %973 = vmatpush1.msra.mxu0 0.0
        %974 = vmatprep.subr.mxu0 0.0
        %975 = vmatpush1.msra.mxu0 0.0
        %976 = vmatprep.subr.mxu0 0.0
        %977 = vmatpush1.msra.mxu0 0.0
        %978 = vmatprep.subr.mxu0 0.0
        %979 = vmatpush1.msra.mxu0 0.0
        %980 = vmatprep.subr.mxu0 0.0
        %981 = vmatpush1.msra.mxu0 0.0
        %982 = vmatprep.subr.mxu0 0.0
        %983 = vmatpush1.msra.mxu0 0.0
        %984 = vmatprep.subr.mxu0 0.0
        %985 = vmatpush1.msra.mxu0 0.0
        %986 = vmatprep.subr.mxu0 0.0
        %987 = vmatpush1.msra.mxu0 0.0
        %988 = vmatprep.subr.mxu0 0.0
        %989 = vmatpush1.msra.mxu0 0.0
        %990 = vmatprep.subr.mxu0 0.0
        %991 = vmatpush1.msra.mxu0 0.0
        %992 = vmatprep.mubr.f32.mxu0 0.0
        %993 = vmatmul.mubr.f32.gmra.mrb[0].mxu0 %v917
        %v994 = vpop.f32.mrb[0].mxu0
        %v995 = vadd.f32 %v898, %v994
        %v996 = vpop.f32.mrb[0].mxu0
        %v997 = vadd.f32 %v898, %v996
        %998 = vmatprep.mubr.f32.mxu0 0.0
        %999 = vmatmul.mubr.f32.gmra.mrb[0].mxu0 %v920
        %v1000 = vpop.f32.mrb[0].mxu0
        %v1001 = vadd.f32 %v903, %v1000
        %v1002 = vpop.f32.mrb[0].mxu0
        %v1003 = vadd.f32 %v903, %v1002
        %1004 = vmatprep.mubr.f32.mxu0 0.0
        %1005 = vmatmul.mubr.f32.gmra.mrb[0].mxu0 %v923
        %v1006 = vpop.f32.mrb[0].mxu0
        %v1007 = vadd.f32 %v908, %v1006
        %v1008 = vpop.f32.mrb[0].mxu0
        %v1009 = vadd.f32 %v908, %v1008
        %1010 = vmatprep.mubr.f32.mxu0 0.0
        %1011 = vmatmul.mubr.f32.gmra.mrb[0].mxu0 %v926
        %v1012 = vpop.f32.mrb[0].mxu0
        %v1013 = vadd.f32 %v913, %v1012
        %v1014 = vpop.f32.mrb[0].mxu0
        %v1015 = vadd.f32 %v913, %v1014
        %1016 = vdwg.mxu0
        %1017 = vmatprep.subr.mxu0 %v750
        %1018 = vmatpush1.msra.mxu0 %v749
        %1019 = vmatprep.subr.mxu0 %v766
        %1020 = vmatpush1.msra.mxu0 %v765
        %1021 = vmatprep.subr.mxu0 %v782
        %1022 = vmatpush1.msra.mxu0 %v781
        %1023 = vmatprep.subr.mxu0 %v798
        %1024 = vmatpush1.msra.mxu0 %v797
        %1025 = vmatprep.subr.mxu0 %v814
        %1026 = vmatpush1.msra.mxu0 %v813
        %1027 = vmatprep.subr.mxu0 %v830
        %1028 = vmatpush1.msra.mxu0 %v829
        %1029 = vmatprep.subr.mxu0 %v846
        %1030 = vmatpush1.msra.mxu0 %v845
        %1031 = vmatprep.subr.mxu0 %v862
        %1032 = vmatpush1.msra.mxu0 %v861
        %1033 = vmatprep.subr.mxu0 %v878
        %1034 = vmatpush1.msra.mxu0 %v877
        %1035 = vmatprep.subr.mxu0 0.0
        %1036 = vmatpush1.msra.mxu0 0.0
        %1037 = vmatprep.subr.mxu0 0.0
        %1038 = vmatpush1.msra.mxu0 0.0
        %1039 = vmatprep.subr.mxu0 0.0
        %1040 = vmatpush1.msra.mxu0 0.0
        %1041 = vmatprep.subr.mxu0 0.0
        %1042 = vmatpush1.msra.mxu0 0.0
        %1043 = vmatprep.subr.mxu0 0.0
        %1044 = vmatpush1.msra.mxu0 0.0
        %1045 = vmatprep.subr.mxu0 0.0
        %1046 = vmatpush1.msra.mxu0 0.0
        %1047 = vmatprep.subr.mxu0 0.0
        %1048 = vmatpush1.msra.mxu0 0.0
        %1049 = vmatprep.subr.mxu0 0.0
        %1050 = vmatpush1.msra.mxu0 0.0
        %1051 = vmatprep.subr.mxu0 0.0
        %1052 = vmatpush1.msra.mxu0 0.0
        %1053 = vmatprep.subr.mxu0 0.0
        %1054 = vmatpush1.msra.mxu0 0.0
        %1055 = vmatprep.subr.mxu0 0.0
        %1056 = vmatpush1.msra.mxu0 0.0
        %1057 = vmatprep.subr.mxu0 0.0
        %1058 = vmatpush1.msra.mxu0 0.0
        %1059 = vmatprep.subr.mxu0 0.0
        %1060 = vmatpush1.msra.mxu0 0.0
        %1061 = vmatprep.subr.mxu0 0.0
        %1062 = vmatpush1.msra.mxu0 0.0
        %1063 = vmatprep.subr.mxu0 0.0
        %1064 = vmatpush1.msra.mxu0 0.0
        %1065 = vmatprep.subr.mxu0 0.0
        %1066 = vmatpush1.msra.mxu0 0.0
        %1067 = vmatprep.subr.mxu0 0.0
        %1068 = vmatpush1.msra.mxu0 0.0
        %1069 = vmatprep.subr.mxu0 0.0
        %1070 = vmatpush1.msra.mxu0 0.0
        %1071 = vmatprep.subr.mxu0 0.0
        %1072 = vmatpush1.msra.mxu0 0.0
        %1073 = vmatprep.subr.mxu0 0.0
        %1074 = vmatpush1.msra.mxu0 0.0
        %1075 = vmatprep.subr.mxu0 0.0
        %1076 = vmatpush1.msra.mxu0 0.0
        %1077 = vmatprep.subr.mxu0 0.0
        %1078 = vmatpush1.msra.mxu0 0.0
        %1079 = vmatprep.subr.mxu0 0.0
        %1080 = vmatpush1.msra.mxu0 0.0
        %1081 = vmatprep.mubr.f32.mxu0 0.0
        %1082 = vmatmul.mubr.f32.gmra.mrb[0].mxu0 %v917
        %v1083 = vpop.f32.mrb[0].mxu0
        %v1084 = vadd.f32 %v898, %v1083
        %v1085 = vpop.f32.mrb[0].mxu0
        %v1086 = vadd.f32 %v898, %v1085
        %1087 = vmatprep.mubr.f32.mxu0 0.0
        %1088 = vmatmul.mubr.f32.gmra.mrb[0].mxu0 %v920
        %v1089 = vpop.f32.mrb[0].mxu0
        %v1090 = vadd.f32 %v903, %v1089
        %v1091 = vpop.f32.mrb[0].mxu0
        %v1092 = vadd.f32 %v903, %v1091
        %1093 = vmatprep.mubr.f32.mxu0 0.0
        %1094 = vmatmul.mubr.f32.gmra.mrb[0].mxu0 %v923
        %v1095 = vpop.f32.mrb[0].mxu0
        %v1096 = vadd.f32 %v908, %v1095
        %v1097 = vpop.f32.mrb[0].mxu0
        %v1098 = vadd.f32 %v908, %v1097
        %1099 = vmatprep.mubr.f32.mxu0 0.0
        %1100 = vmatmul.mubr.f32.gmra.mrb[0].mxu0 %v926
        %v1101 = vpop.f32.mrb[0].mxu0
        %v1102 = vadd.f32 %v913, %v1101
        %v1103 = vpop.f32.mrb[0].mxu0
        %v1104 = vadd.f32 %v913, %v1103
        %1105 = vdwg.mxu0
        %1106 = vmatprep.subr.mxu0 %v752
        %1107 = vmatpush1.msra.mxu0 %v751
        %1108 = vmatprep.subr.mxu0 %v768
        %1109 = vmatpush1.msra.mxu0 %v767
        %1110 = vmatprep.subr.mxu0 %v784
        %1111 = vmatpush1.msra.mxu0 %v783
        %1112 = vmatprep.subr.mxu0 %v800
        %1113 = vmatpush1.msra.mxu0 %v799
        %1114 = vmatprep.subr.mxu0 %v816
        %1115 = vmatpush1.msra.mxu0 %v815
        %1116 = vmatprep.subr.mxu0 %v832
        %1117 = vmatpush1.msra.mxu0 %v831
        %1118 = vmatprep.subr.mxu0 %v848
        %1119 = vmatpush1.msra.mxu0 %v847
        %1120 = vmatprep.subr.mxu0 %v864
        %1121 = vmatpush1.msra.mxu0 %v863
        %1122 = vmatprep.subr.mxu0 %v880
        %1123 = vmatpush1.msra.mxu0 %v879
        %1124 = vmatprep.subr.mxu0 0.0
        %1125 = vmatpush1.msra.mxu0 0.0
        %1126 = vmatprep.subr.mxu0 0.0
        %1127 = vmatpush1.msra.mxu0 0.0
        %1128 = vmatprep.subr.mxu0 0.0
        %1129 = vmatpush1.msra.mxu0 0.0
        %1130 = vmatprep.subr.mxu0 0.0
        %1131 = vmatpush1.msra.mxu0 0.0
        %1132 = vmatprep.subr.mxu0 0.0
        %1133 = vmatpush1.msra.mxu0 0.0
        %1134 = vmatprep.subr.mxu0 0.0
        %1135 = vmatpush1.msra.mxu0 0.0
        %1136 = vmatprep.subr.mxu0 0.0
        %1137 = vmatpush1.msra.mxu0 0.0
        %1138 = vmatprep.subr.mxu0 0.0
        %1139 = vmatpush1.msra.mxu0 0.0
        %1140 = vmatprep.subr.mxu0 0.0
        %1141 = vmatpush1.msra.mxu0 0.0
        %1142 = vmatprep.subr.mxu0 0.0
        %1143 = vmatpush1.msra.mxu0 0.0
        %1144 = vmatprep.subr.mxu0 0.0
        %1145 = vmatpush1.msra.mxu0 0.0
        %1146 = vmatprep.subr.mxu0 0.0
        %1147 = vmatpush1.msra.mxu0 0.0
        %1148 = vmatprep.subr.mxu0 0.0
        %1149 = vmatpush1.msra.mxu0 0.0
        %1150 = vmatprep.subr.mxu0 0.0
        %1151 = vmatpush1.msra.mxu0 0.0
        %1152 = vmatprep.subr.mxu0 0.0
        %1153 = vmatpush1.msra.mxu0 0.0
        %1154 = vmatprep.subr.mxu0 0.0
        %1155 = vmatpush1.msra.mxu0 0.0
        %1156 = vmatprep.subr.mxu0 0.0
        %1157 = vmatpush1.msra.mxu0 0.0
        %1158 = vmatprep.subr.mxu0 0.0
        %1159 = vmatpush1.msra.mxu0 0.0
        %1160 = vmatprep.subr.mxu0 0.0
        %1161 = vmatpush1.msra.mxu0 0.0
        %1162 = vmatprep.subr.mxu0 0.0
        %1163 = vmatpush1.msra.mxu0 0.0
        %1164 = vmatprep.subr.mxu0 0.0
        %1165 = vmatpush1.msra.mxu0 0.0
        %1166 = vmatprep.subr.mxu0 0.0
        %1167 = vmatpush1.msra.mxu0 0.0
        %1168 = vmatprep.subr.mxu0 0.0
        %1169 = vmatpush1.msra.mxu0 0.0
        %1170 = vmatprep.mubr.f32.mxu0 0.0
        %1171 = vmatmul.mubr.f32.gmra.mrb[0].mxu0 %v917
        %v1172 = vpop.f32.mrb[0].mxu0
        %v1173 = vadd.f32 %v898, %v1172
        %v1174 = vpop.f32.mrb[0].mxu0
        %v1175 = vadd.f32 %v898, %v1174
        %1176 = vmatprep.mubr.f32.mxu0 0.0
        %1177 = vmatmul.mubr.f32.gmra.mrb[0].mxu0 %v920
        %v1178 = vpop.f32.mrb[0].mxu0
        %v1179 = vadd.f32 %v903, %v1178
        %v1180 = vpop.f32.mrb[0].mxu0
        %v1181 = vadd.f32 %v903, %v1180
        %1182 = vmatprep.mubr.f32.mxu0 0.0
        %1183 = vmatmul.mubr.f32.gmra.mrb[0].mxu0 %v923
        %v1184 = vpop.f32.mrb[0].mxu0
        %v1185 = vadd.f32 %v908, %v1184
        %v1186 = vpop.f32.mrb[0].mxu0
        %v1187 = vadd.f32 %v908, %v1186
        %1188 = vmatprep.mubr.f32.mxu0 0.0
        %1189 = vmatmul.mubr.f32.gmra.mrb[0].mxu0 %v926
        %v1190 = vpop.f32.mrb[0].mxu0
        %v1191 = vadd.f32 %v913, %v1190
        %v1192 = vpop.f32.mrb[0].mxu0
        %v1193 = vadd.f32 %v913, %v1192
        %1194 = vdwg.mxu0
        %1195 = vmatprep.subr.mxu0 %v754
        %1196 = vmatpush1.msra.mxu0 %v753
        %1197 = vmatprep.subr.mxu0 %v770
        %1198 = vmatpush1.msra.mxu0 %v769
        %1199 = vmatprep.subr.mxu0 %v786
        %1200 = vmatpush1.msra.mxu0 %v785
        %1201 = vmatprep.subr.mxu0 %v802
        %1202 = vmatpush1.msra.mxu0 %v801
        %1203 = vmatprep.subr.mxu0 %v818
        %1204 = vmatpush1.msra.mxu0 %v817
        %1205 = vmatprep.subr.mxu0 %v834
        %1206 = vmatpush1.msra.mxu0 %v833
        %1207 = vmatprep.subr.mxu0 %v850
        %1208 = vmatpush1.msra.mxu0 %v849
        %1209 = vmatprep.subr.mxu0 %v866
        %1210 = vmatpush1.msra.mxu0 %v865
        %1211 = vmatprep.subr.mxu0 %v882
        %1212 = vmatpush1.msra.mxu0 %v881
        %1213 = vmatprep.subr.mxu0 0.0
        %1214 = vmatpush1.msra.mxu0 0.0
        %1215 = vmatprep.subr.mxu0 0.0
        %1216 = vmatpush1.msra.mxu0 0.0
        %1217 = vmatprep.subr.mxu0 0.0
        %1218 = vmatpush1.msra.mxu0 0.0
        %1219 = vmatprep.subr.mxu0 0.0
        %1220 = vmatpush1.msra.mxu0 0.0
        %1221 = vmatprep.subr.mxu0 0.0
        %1222 = vmatpush1.msra.mxu0 0.0
        %1223 = vmatprep.subr.mxu0 0.0
        %1224 = vmatpush1.msra.mxu0 0.0
        %1225 = vmatprep.subr.mxu0 0.0
        %1226 = vmatpush1.msra.mxu0 0.0
        %1227 = vmatprep.subr.mxu0 0.0
        %1228 = vmatpush1.msra.mxu0 0.0
        %1229 = vmatprep.subr.mxu0 0.0
        %1230 = vmatpush1.msra.mxu0 0.0
        %1231 = vmatprep.subr.mxu0 0.0
        %1232 = vmatpush1.msra.mxu0 0.0
        %1233 = vmatprep.subr.mxu0 0.0
        %1234 = vmatpush1.msra.mxu0 0.0
        %1235 = vmatprep.subr.mxu0 0.0
        %1236 = vmatpush1.msra.mxu0 0.0
        %1237 = vmatprep.subr.mxu0 0.0
        %1238 = vmatpush1.msra.mxu0 0.0
        %1239 = vmatprep.subr.mxu0 0.0
        %1240 = vmatpush1.msra.mxu0 0.0
        %1241 = vmatprep.subr.mxu0 0.0
        %1242 = vmatpush1.msra.mxu0 0.0
        %1243 = vmatprep.subr.mxu0 0.0
        %1244 = vmatpush1.msra.mxu0 0.0
        %1245 = vmatprep.subr.mxu0 0.0
        %1246 = vmatpush1.msra.mxu0 0.0
        %1247 = vmatprep.subr.mxu0 0.0
        %1248 = vmatpush1.msra.mxu0 0.0
        %1249 = vmatprep.subr.mxu0 0.0
        %1250 = vmatpush1.msra.mxu0 0.0
        %1251 = vmatprep.subr.mxu0 0.0
        %1252 = vmatpush1.msra.mxu0 0.0
        %1253 = vmatprep.subr.mxu0 0.0
        %1254 = vmatpush1.msra.mxu0 0.0
        %1255 = vmatprep.subr.mxu0 0.0
        %1256 = vmatpush1.msra.mxu0 0.0
        %1257 = vmatprep.subr.mxu0 0.0
        %1258 = vmatpush1.msra.mxu0 0.0
        %1259 = vmatprep.mubr.f32.mxu0 0.0
        %1260 = vmatmul.mubr.f32.gmra.mrb[0].mxu0 %v917
        %v1261 = vpop.f32.mrb[0].mxu0
        %v1262 = vadd.f32 %v898, %v1261
        %v1263 = vpop.f32.mrb[0].mxu0
        %v1264 = vadd.f32 %v898, %v1263
        %1265 = vmatprep.mubr.f32.mxu0 0.0
        %1266 = vmatmul.mubr.f32.gmra.mrb[0].mxu0 %v920
        %v1267 = vpop.f32.mrb[0].mxu0
        %v1268 = vadd.f32 %v903, %v1267
        %v1269 = vpop.f32.mrb[0].mxu0
        %v1270 = vadd.f32 %v903, %v1269
        %1271 = vmatprep.mubr.f32.mxu0 0.0
        %1272 = vmatmul.mubr.f32.gmra.mrb[0].mxu0 %v923
        %v1273 = vpop.f32.mrb[0].mxu0
        %v1274 = vadd.f32 %v908, %v1273
        %v1275 = vpop.f32.mrb[0].mxu0
        %v1276 = vadd.f32 %v908, %v1275
        %1277 = vmatprep.mubr.f32.mxu0 0.0
        %1278 = vmatmul.mubr.f32.gmra.mrb[0].mxu0 %v926
        %v1279 = vpop.f32.mrb[0].mxu0
        %v1280 = vadd.f32 %v913, %v1279
        %v1281 = vpop.f32.mrb[0].mxu0
        %v1282 = vadd.f32 %v913, %v1281
        %1283 = vdwg.mxu0
        %1284 = vmatprep.subr.mxu0 %v756
        %1285 = vmatpush1.msra.mxu0 %v755
        %1286 = vmatprep.subr.mxu0 %v772
        %1287 = vmatpush1.msra.mxu0 %v771
        %1288 = vmatprep.subr.mxu0 %v788
        %1289 = vmatpush1.msra.mxu0 %v787
        %1290 = vmatprep.subr.mxu0 %v804
        %1291 = vmatpush1.msra.mxu0 %v803
        %1292 = vmatprep.subr.mxu0 %v820
        %1293 = vmatpush1.msra.mxu0 %v819
        %1294 = vmatprep.subr.mxu0 %v836
        %1295 = vmatpush1.msra.mxu0 %v835
        %1296 = vmatprep.subr.mxu0 %v852
        %1297 = vmatpush1.msra.mxu0 %v851
        %1298 = vmatprep.subr.mxu0 %v868
        %1299 = vmatpush1.msra.mxu0 %v867
        %1300 = vmatprep.subr.mxu0 %v884
        %1301 = vmatpush1.msra.mxu0 %v883
        %1302 = vmatprep.subr.mxu0 0.0
        %1303 = vmatpush1.msra.mxu0 0.0
        %1304 = vmatprep.subr.mxu0 0.0
        %1305 = vmatpush1.msra.mxu0 0.0
        %1306 = vmatprep.subr.mxu0 0.0
        %1307 = vmatpush1.msra.mxu0 0.0
        %1308 = vmatprep.subr.mxu0 0.0
        %1309 = vmatpush1.msra.mxu0 0.0
        %1310 = vmatprep.subr.mxu0 0.0
        %1311 = vmatpush1.msra.mxu0 0.0
        %1312 = vmatprep.subr.mxu0 0.0
        %1313 = vmatpush1.msra.mxu0 0.0
        %1314 = vmatprep.subr.mxu0 0.0
        %1315 = vmatpush1.msra.mxu0 0.0
        %1316 = vmatprep.subr.mxu0 0.0
        %1317 = vmatpush1.msra.mxu0 0.0
        %1318 = vmatprep.subr.mxu0 0.0
        %1319 = vmatpush1.msra.mxu0 0.0
        %1320 = vmatprep.subr.mxu0 0.0
        %1321 = vmatpush1.msra.mxu0 0.0
        %1322 = vmatprep.subr.mxu0 0.0
        %1323 = vmatpush1.msra.mxu0 0.0
        %1324 = vmatprep.subr.mxu0 0.0
        %1325 = vmatpush1.msra.mxu0 0.0
        %1326 = vmatprep.subr.mxu0 0.0
        %1327 = vmatpush1.msra.mxu0 0.0
        %1328 = vmatprep.subr.mxu0 0.0
        %1329 = vmatpush1.msra.mxu0 0.0
        %1330 = vmatprep.subr.mxu0 0.0
        %1331 = vmatpush1.msra.mxu0 0.0
        %1332 = vmatprep.subr.mxu0 0.0
        %1333 = vmatpush1.msra.mxu0 0.0
        %1334 = vmatprep.subr.mxu0 0.0
        %1335 = vmatpush1.msra.mxu0 0.0
        %1336 = vmatprep.subr.mxu0 0.0
        %1337 = vmatpush1.msra.mxu0 0.0
        %1338 = vmatprep.subr.mxu0 0.0
        %1339 = vmatpush1.msra.mxu0 0.0
        %1340 = vmatprep.subr.mxu0 0.0
        %1341 = vmatpush1.msra.mxu0 0.0
        %1342 = vmatprep.subr.mxu0 0.0
        %1343 = vmatpush1.msra.mxu0 0.0
        %1344 = vmatprep.subr.mxu0 0.0
        %1345 = vmatpush1.msra.mxu0 0.0
        %1346 = vmatprep.subr.mxu0 0.0
        %1347 = vmatpush1.msra.mxu0 0.0
        %1348 = vmatprep.mubr.f32.mxu0 0.0
        %1349 = vmatmul.mubr.f32.gmra.mrb[0].mxu0 %v917
        %v1350 = vpop.f32.mrb[0].mxu0
        %v1351 = vadd.f32 %v898, %v1350
        %v1352 = vpop.f32.mrb[0].mxu0
        %v1353 = vadd.f32 %v898, %v1352
        %1354 = vmatprep.mubr.f32.mxu0 0.0
        %1355 = vmatmul.mubr.f32.gmra.mrb[0].mxu0 %v920
        %v1356 = vpop.f32.mrb[0].mxu0
        %v1357 = vadd.f32 %v903, %v1356
        %v1358 = vpop.f32.mrb[0].mxu0
        %v1359 = vadd.f32 %v903, %v1358
        %1360 = vmatprep.mubr.f32.mxu0 0.0
        %1361 = vmatmul.mubr.f32.gmra.mrb[0].mxu0 %v923
        %v1362 = vpop.f32.mrb[0].mxu0
        %v1363 = vadd.f32 %v908, %v1362
        %v1364 = vpop.f32.mrb[0].mxu0
        %v1365 = vadd.f32 %v908, %v1364
        %1366 = vmatprep.mubr.f32.mxu0 0.0
        %1367 = vmatmul.mubr.f32.gmra.mrb[0].mxu0 %v926
        %v1368 = vpop.f32.mrb[0].mxu0
        %v1369 = vadd.f32 %v913, %v1368
        %v1370 = vpop.f32.mrb[0].mxu0
        %v1371 = vadd.f32 %v913, %v1370
        %1372 = vdwg.mxu0
        %1373 = vmatprep.subr.mxu0 %v758
        %1374 = vmatpush1.msra.mxu0 %v757
        %1375 = vmatprep.subr.mxu0 %v774
        %1376 = vmatpush1.msra.mxu0 %v773
        %1377 = vmatprep.subr.mxu0 %v790
        %1378 = vmatpush1.msra.mxu0 %v789
        %1379 = vmatprep.subr.mxu0 %v806
        %1380 = vmatpush1.msra.mxu0 %v805
        %1381 = vmatprep.subr.mxu0 %v822
        %1382 = vmatpush1.msra.mxu0 %v821
        %1383 = vmatprep.subr.mxu0 %v838
        %1384 = vmatpush1.msra.mxu0 %v837
        %1385 = vmatprep.subr.mxu0 %v854
        %1386 = vmatpush1.msra.mxu0 %v853
        %1387 = vmatprep.subr.mxu0 %v870
        %1388 = vmatpush1.msra.mxu0 %v869
        %1389 = vmatprep.subr.mxu0 %v886
        %1390 = vmatpush1.msra.mxu0 %v885
        %1391 = vmatprep.subr.mxu0 0.0
        %1392 = vmatpush1.msra.mxu0 0.0
        %1393 = vmatprep.subr.mxu0 0.0
        %1394 = vmatpush1.msra.mxu0 0.0
        %1395 = vmatprep.subr.mxu0 0.0
        %1396 = vmatpush1.msra.mxu0 0.0
        %1397 = vmatprep.subr.mxu0 0.0
        %1398 = vmatpush1.msra.mxu0 0.0
        %1399 = vmatprep.subr.mxu0 0.0
        %1400 = vmatpush1.msra.mxu0 0.0
        %1401 = vmatprep.subr.mxu0 0.0
        %1402 = vmatpush1.msra.mxu0 0.0
        %1403 = vmatprep.subr.mxu0 0.0
        %1404 = vmatpush1.msra.mxu0 0.0
        %1405 = vmatprep.subr.mxu0 0.0
        %1406 = vmatpush1.msra.mxu0 0.0
        %1407 = vmatprep.subr.mxu0 0.0
        %1408 = vmatpush1.msra.mxu0 0.0
        %1409 = vmatprep.subr.mxu0 0.0
        %1410 = vmatpush1.msra.mxu0 0.0
        %1411 = vmatprep.subr.mxu0 0.0
        %1412 = vmatpush1.msra.mxu0 0.0
        %1413 = vmatprep.subr.mxu0 0.0
        %1414 = vmatpush1.msra.mxu0 0.0
        %1415 = vmatprep.subr.mxu0 0.0
        %1416 = vmatpush1.msra.mxu0 0.0
        %1417 = vmatprep.subr.mxu0 0.0
        %1418 = vmatpush1.msra.mxu0 0.0
        %1419 = vmatprep.subr.mxu0 0.0
        %1420 = vmatpush1.msra.mxu0 0.0
        %1421 = vmatprep.subr.mxu0 0.0
        %1422 = vmatpush1.msra.mxu0 0.0
        %1423 = vmatprep.subr.mxu0 0.0
        %1424 = vmatpush1.msra.mxu0 0.0
        %1425 = vmatprep.subr.mxu0 0.0
        %1426 = vmatpush1.msra.mxu0 0.0
        %1427 = vmatprep.subr.mxu0 0.0
        %1428 = vmatpush1.msra.mxu0 0.0
        %1429 = vmatprep.subr.mxu0 0.0
        %1430 = vmatpush1.msra.mxu0 0.0
        %1431 = vmatprep.subr.mxu0 0.0
        %1432 = vmatpush1.msra.mxu0 0.0
        %1433 = vmatprep.subr.mxu0 0.0
        %1434 = vmatpush1.msra.mxu0 0.0
        %1435 = vmatprep.subr.mxu0 0.0
        %1436 = vmatpush1.msra.mxu0 0.0
        %1437 = vmatprep.mubr.f32.mxu0 0.0
        %1438 = vmatmul.mubr.f32.gmra.mrb[0].mxu0 %v917
        %v1439 = vpop.f32.mrb[0].mxu0
        %v1440 = vadd.f32 %v898, %v1439
        %v1441 = vpop.f32.mrb[0].mxu0
        %v1442 = vadd.f32 %v898, %v1441
        %1443 = vmatprep.mubr.f32.mxu0 0.0
        %1444 = vmatmul.mubr.f32.gmra.mrb[0].mxu0 %v920
        %v1445 = vpop.f32.mrb[0].mxu0
        %v1446 = vadd.f32 %v903, %v1445
        %v1447 = vpop.f32.mrb[0].mxu0
        %v1448 = vadd.f32 %v903, %v1447
        %1449 = vmatprep.mubr.f32.mxu0 0.0
        %1450 = vmatmul.mubr.f32.gmra.mrb[0].mxu0 %v923
        %v1451 = vpop.f32.mrb[0].mxu0
        %v1452 = vadd.f32 %v908, %v1451
        %v1453 = vpop.f32.mrb[0].mxu0
        %v1454 = vadd.f32 %v908, %v1453
        %1455 = vmatprep.mubr.f32.mxu0 0.0
        %1456 = vmatmul.mubr.f32.gmra.mrb[0].mxu0 %v926
        %v1457 = vpop.f32.mrb[0].mxu0
        %v1458 = vadd.f32 %v913, %v1457
        %v1459 = vpop.f32.mrb[0].mxu0
        %v1460 = vadd.f32 %v913, %v1459
        %1461 = vdwg.mxu0
        %1462 = vmatprep.subr.mxu0 %v760
        %1463 = vmatpush1.msra.mxu0 %v759
        %1464 = vmatprep.subr.mxu0 %v776
        %1465 = vmatpush1.msra.mxu0 %v775
        %1466 = vmatprep.subr.mxu0 %v792
        %1467 = vmatpush1.msra.mxu0 %v791
        %1468 = vmatprep.subr.mxu0 %v808
        %1469 = vmatpush1.msra.mxu0 %v807
        %1470 = vmatprep.subr.mxu0 %v824
        %1471 = vmatpush1.msra.mxu0 %v823
        %1472 = vmatprep.subr.mxu0 %v840
        %1473 = vmatpush1.msra.mxu0 %v839
        %1474 = vmatprep.subr.mxu0 %v856
        %1475 = vmatpush1.msra.mxu0 %v855
        %1476 = vmatprep.subr.mxu0 %v872
        %1477 = vmatpush1.msra.mxu0 %v871
        %1478 = vmatprep.subr.mxu0 %v888
        %1479 = vmatpush1.msra.mxu0 %v887
        %1480 = vmatprep.subr.mxu0 0.0
        %1481 = vmatpush1.msra.mxu0 0.0
        %1482 = vmatprep.subr.mxu0 0.0
        %1483 = vmatpush1.msra.mxu0 0.0
        %1484 = vmatprep.subr.mxu0 0.0
        %1485 = vmatpush1.msra.mxu0 0.0
        %1486 = vmatprep.subr.mxu0 0.0
        %1487 = vmatpush1.msra.mxu0 0.0
        %1488 = vmatprep.subr.mxu0 0.0
        %1489 = vmatpush1.msra.mxu0 0.0
        %1490 = vmatprep.subr.mxu0 0.0
        %1491 = vmatpush1.msra.mxu0 0.0
        %1492 = vmatprep.subr.mxu0 0.0
        %1493 = vmatpush1.msra.mxu0 0.0
        %1494 = vmatprep.subr.mxu0 0.0
        %1495 = vmatpush1.msra.mxu0 0.0
        %1496 = vmatprep.subr.mxu0 0.0
        %1497 = vmatpush1.msra.mxu0 0.0
        %1498 = vmatprep.subr.mxu0 0.0
        %1499 = vmatpush1.msra.mxu0 0.0
        %1500 = vmatprep.subr.mxu0 0.0
        %1501 = vmatpush1.msra.mxu0 0.0
        %1502 = vmatprep.subr.mxu0 0.0
        %1503 = vmatpush1.msra.mxu0 0.0
        %1504 = vmatprep.subr.mxu0 0.0
        %1505 = vmatpush1.msra.mxu0 0.0
        %1506 = vmatprep.subr.mxu0 0.0
        %1507 = vmatpush1.msra.mxu0 0.0
        %1508 = vmatprep.subr.mxu0 0.0
        %1509 = vmatpush1.msra.mxu0 0.0
        %1510 = vmatprep.subr.mxu0 0.0
        %1511 = vmatpush1.msra.mxu0 0.0
        %1512 = vmatprep.subr.mxu0 0.0
        %1513 = vmatpush1.msra.mxu0 0.0
        %1514 = vmatprep.subr.mxu0 0.0
        %1515 = vmatpush1.msra.mxu0 0.0
        %1516 = vmatprep.subr.mxu0 0.0
        %1517 = vmatpush1.msra.mxu0 0.0
        %1518 = vmatprep.subr.mxu0 0.0
        %1519 = vmatpush1.msra.mxu0 0.0
        %1520 = vmatprep.subr.mxu0 0.0
        %1521 = vmatpush1.msra.mxu0 0.0
        %1522 = vmatprep.subr.mxu0 0.0
        %1523 = vmatpush1.msra.mxu0 0.0
        %1524 = vmatprep.subr.mxu0 0.0
        %1525 = vmatpush1.msra.mxu0 0.0
        %1526 = vmatprep.mubr.f32.mxu0 0.0
        %1527 = vmatmul.mubr.f32.gmra.mrb[0].mxu0 %v917
        %v1528 = vpop.f32.mrb[0].mxu0
        %v1529 = vadd.f32 %v898, %v1528
        %v1530 = vpop.f32.mrb[0].mxu0
        %v1531 = vadd.f32 %v898, %v1530
        %1532 = vmatprep.mubr.f32.mxu0 0.0
        %1533 = vmatmul.mubr.f32.gmra.mrb[0].mxu0 %v920
        %v1534 = vpop.f32.mrb[0].mxu0
        %v1535 = vadd.f32 %v903, %v1534
        %v1536 = vpop.f32.mrb[0].mxu0
        %v1537 = vadd.f32 %v903, %v1536
        %1538 = vmatprep.mubr.f32.mxu0 0.0
        %1539 = vmatmul.mubr.f32.gmra.mrb[0].mxu0 %v923
        %v1540 = vpop.f32.mrb[0].mxu0
        %v1541 = vadd.f32 %v908, %v1540
        %v1542 = vpop.f32.mrb[0].mxu0
        %v1543 = vadd.f32 %v908, %v1542
        %1544 = vmatprep.mubr.f32.mxu0 0.0
        %1545 = vmatmul.mubr.f32.gmra.mrb[0].mxu0 %v926
        %v1546 = vpop.f32.mrb[0].mxu0
        %v1547 = vadd.f32 %v913, %v1546
        %v1548 = vpop.f32.mrb[0].mxu0
        %v1549 = vadd.f32 %v913, %v1548
        %1550 = vdwg.mxu0
        %1551 = vmatprep.subr.mxu0 %v762
        %1552 = vmatpush1.msra.mxu0 %v761
        %1553 = vmatprep.subr.mxu0 %v778
        %1554 = vmatpush1.msra.mxu0 %v777
        %1555 = vmatprep.subr.mxu0 %v794
        %1556 = vmatpush1.msra.mxu0 %v793
        %1557 = vmatprep.subr.mxu0 %v810
        %1558 = vmatpush1.msra.mxu0 %v809
        %1559 = vmatprep.subr.mxu0 %v826
        %1560 = vmatpush1.msra.mxu0 %v825
        %1561 = vmatprep.subr.mxu0 %v842
        %1562 = vmatpush1.msra.mxu0 %v841
        %1563 = vmatprep.subr.mxu0 %v858
        %1564 = vmatpush1.msra.mxu0 %v857
        %1565 = vmatprep.subr.mxu0 %v874
        %1566 = vmatpush1.msra.mxu0 %v873
        %1567 = vmatprep.subr.mxu0 %v890
        %1568 = vmatpush1.msra.mxu0 %v889
        %1569 = vmatprep.subr.mxu0 0.0
        %1570 = vmatpush1.msra.mxu0 0.0
        %1571 = vmatprep.subr.mxu0 0.0
        %1572 = vmatpush1.msra.mxu0 0.0
        %1573 = vmatprep.subr.mxu0 0.0
        %1574 = vmatpush1.msra.mxu0 0.0
        %1575 = vmatprep.subr.mxu0 0.0
        %1576 = vmatpush1.msra.mxu0 0.0
        %1577 = vmatprep.subr.mxu0 0.0
        %1578 = vmatpush1.msra.mxu0 0.0
        %1579 = vmatprep.subr.mxu0 0.0
        %1580 = vmatpush1.msra.mxu0 0.0
        %1581 = vmatprep.subr.mxu0 0.0
        %1582 = vmatpush1.msra.mxu0 0.0
        %1583 = vmatprep.subr.mxu0 0.0
        %1584 = vmatpush1.msra.mxu0 0.0
        %1585 = vmatprep.subr.mxu0 0.0
        %1586 = vmatpush1.msra.mxu0 0.0
        %1587 = vmatprep.subr.mxu0 0.0
        %1588 = vmatpush1.msra.mxu0 0.0
        %1589 = vmatprep.subr.mxu0 0.0
        %1590 = vmatpush1.msra.mxu0 0.0
        %1591 = vmatprep.subr.mxu0 0.0
        %1592 = vmatpush1.msra.mxu0 0.0
        %1593 = vmatprep.subr.mxu0 0.0
        %1594 = vmatpush1.msra.mxu0 0.0
        %1595 = vmatprep.subr.mxu0 0.0
        %1596 = vmatpush1.msra.mxu0 0.0
        %1597 = vmatprep.subr.mxu0 0.0
        %1598 = vmatpush1.msra.mxu0 0.0
        %1599 = vmatprep.subr.mxu0 0.0
        %1600 = vmatpush1.msra.mxu0 0.0
        %1601 = vmatprep.subr.mxu0 0.0
        %1602 = vmatpush1.msra.mxu0 0.0
        %1603 = vmatprep.subr.mxu0 0.0
        %1604 = vmatpush1.msra.mxu0 0.0
        %1605 = vmatprep.subr.mxu0 0.0
        %1606 = vmatpush1.msra.mxu0 0.0
        %1607 = vmatprep.subr.mxu0 0.0
        %1608 = vmatpush1.msra.mxu0 0.0
        %1609 = vmatprep.subr.mxu0 0.0
        %1610 = vmatpush1.msra.mxu0 0.0
        %1611 = vmatprep.subr.mxu0 0.0
        %1612 = vmatpush1.msra.mxu0 0.0
        %1613 = vmatprep.subr.mxu0 0.0
        %1614 = vmatpush1.msra.mxu0 0.0
        %1615 = vmatprep.mubr.f32.mxu0 0.0
        %1616 = vmatmul.mubr.f32.gmra.mrb[0].mxu0 %v917
        %v1617 = vpop.f32.mrb[0].mxu0
        %v1618 = vadd.f32 %v898, %v1617
        %v1619 = vpop.f32.mrb[0].mxu0
        %v1620 = vadd.f32 %v898, %v1619
        %1621 = vmatprep.mubr.f32.mxu0 0.0
        %1622 = vmatmul.mubr.f32.gmra.mrb[0].mxu0 %v920
        %v1623 = vpop.f32.mrb[0].mxu0
        %v1624 = vadd.f32 %v903, %v1623
        %v1625 = vpop.f32.mrb[0].mxu0
        %v1626 = vadd.f32 %v903, %v1625
        %1627 = vmatprep.mubr.f32.mxu0 0.0
        %1628 = vmatmul.mubr.f32.gmra.mrb[0].mxu0 %v923
        %v1629 = vpop.f32.mrb[0].mxu0
        %v1630 = vadd.f32 %v908, %v1629
        %v1631 = vpop.f32.mrb[0].mxu0
        %v1632 = vadd.f32 %v908, %v1631
        %1633 = vmatprep.mubr.f32.mxu0 0.0
        %1634 = vmatmul.mubr.f32.gmra.mrb[0].mxu0 %v926
        %v1635 = vpop.f32.mrb[0].mxu0
        %v1636 = vadd.f32 %v913, %v1635
        %v1637 = vpop.f32.mrb[0].mxu0
        %v1638 = vadd.f32 %v913, %v1637
        %1639 = vdwg.mxu0
        %v1640 = vmax.f32 %v995, 0.0
        %v1641 = vmax.f32 %v997, 0.0
        %v1642 = vmax.f32 %v1084, 0.0
        %v1643 = vmax.f32 %v1086, 0.0
        %v1644 = vmax.f32 %v1173, 0.0
        %v1645 = vmax.f32 %v1175, 0.0
        %v1646 = vmax.f32 %v1262, 0.0
        %v1647 = vmax.f32 %v1264, 0.0
        %v1648 = vmax.f32 %v1351, 0.0
        %v1649 = vmax.f32 %v1353, 0.0
        %v1650 = vmax.f32 %v1440, 0.0
        %v1651 = vmax.f32 %v1442, 0.0
        %v1652 = vmax.f32 %v1529, 0.0
        %v1653 = vmax.f32 %v1531, 0.0
        %v1654 = vmax.f32 %v1618, 0.0
        %v1655 = vmax.f32 %v1620, 0.0
        %v1656 = vmax.f32 %v1001, 0.0
        %v1657 = vmax.f32 %v1003, 0.0
        %v1658 = vmax.f32 %v1090, 0.0
        %v1659 = vmax.f32 %v1092, 0.0
        %v1660 = vmax.f32 %v1179, 0.0
        %v1661 = vmax.f32 %v1181, 0.0
        %v1662 = vmax.f32 %v1268, 0.0
        %v1663 = vmax.f32 %v1270, 0.0
        %v1664 = vmax.f32 %v1357, 0.0
        %v1665 = vmax.f32 %v1359, 0.0
        %v1666 = vmax.f32 %v1446, 0.0
        %v1667 = vmax.f32 %v1448, 0.0
        %v1668 = vmax.f32 %v1535, 0.0
        %v1669 = vmax.f32 %v1537, 0.0
        %v1670 = vmax.f32 %v1624, 0.0
        %v1671 = vmax.f32 %v1626, 0.0
        %v1672 = vmax.f32 %v1007, 0.0
        %v1673 = vmax.f32 %v1009, 0.0
        %v1674 = vmax.f32 %v1096, 0.0
        %v1675 = vmax.f32 %v1098, 0.0
        %v1676 = vmax.f32 %v1185, 0.0
        %v1677 = vmax.f32 %v1187, 0.0
        %v1678 = vmax.f32 %v1274, 0.0
        %v1679 = vmax.f32 %v1276, 0.0
        %v1680 = vmax.f32 %v1363, 0.0
        %v1681 = vmax.f32 %v1365, 0.0
        %v1682 = vmax.f32 %v1452, 0.0
        %v1683 = vmax.f32 %v1454, 0.0
        %v1684 = vmax.f32 %v1541, 0.0
        %v1685 = vmax.f32 %v1543, 0.0
        %v1686 = vmax.f32 %v1630, 0.0
        %v1687 = vmax.f32 %v1632, 0.0
        %v1688 = vmax.f32 %v1013, 0.0
        %v1689 = vmax.f32 %v1015, 0.0
        %v1690 = vmax.f32 %v1102, 0.0
        %v1691 = vmax.f32 %v1104, 0.0
        %v1692 = vmax.f32 %v1191, 0.0
        %v1693 = vmax.f32 %v1193, 0.0
        %v1694 = vmax.f32 %v1280, 0.0
        %v1695 = vmax.f32 %v1282, 0.0
        %v1696 = vmax.f32 %v1369, 0.0
        %v1697 = vmax.f32 %v1371, 0.0
        %v1698 = vmax.f32 %v1458, 0.0
        %v1699 = vmax.f32 %v1460, 0.0
        %v1700 = vmax.f32 %v1547, 0.0
        %v1701 = vmax.f32 %v1549, 0.0
        %v1702 = vmax.f32 %v1636, 0.0
        %v1703 = vmax.f32 %v1638, 0.0
        %1704 = vst [vmem:[%s186] sm:$0xff] %v1640
        %1705 = vst [vmem:[%s186 + $0x8] sm:$0xff] %v1641
        %1706 = vst [vmem:[%s186 + $0x10] sm:$0xff] %v1642
        %1707 = vst [vmem:[%s186 + $0x18] sm:$0xff] %v1643
        %1708 = vst [vmem:[%s186 + $0x20] sm:$0xff] %v1644
        %1709 = vst [vmem:[%s186 + $0x28] sm:$0xff] %v1645
        %1710 = vst [vmem:[%s186 + $0x30] sm:$0xff] %v1646
        %1711 = vst [vmem:[%s186 + $0x38] sm:$0xff] %v1647
        %1712 = vst [vmem:[%s186 + $0x40] sm:$0xff] %v1648
        %1713 = vst [vmem:[%s186 + $0x48] sm:$0xff] %v1649
        %1714 = vst [vmem:[%s186 + $0x50] sm:$0xff] %v1650
        %1715 = vst [vmem:[%s186 + $0x58] sm:$0xff] %v1651
        %1716 = vst [vmem:[%s186 + $0x60] sm:$0xff] %v1652
        %1717 = vst [vmem:[%s186 + $0x68] sm:$0xff] %v1653
        %1718 = vst [vmem:[%s186 + $0x70] sm:$0xff] %v1654
        %1719 = vst [vmem:[%s186 + $0x78] sm:$0xff] %v1655
        %1720 = vst [vmem:[%s186 + $0x80] sm:$0xff] %v1656
        %1721 = vst [vmem:[%s186 + $0x88] sm:$0xff] %v1657
        %1722 = vst [vmem:[%s186 + $0x90] sm:$0xff] %v1658
        %1723 = vst [vmem:[%s186 + $0x98] sm:$0xff] %v1659
        %1724 = vst [vmem:[%s186 + $0xa0] sm:$0xff] %v1660
        %1725 = vst [vmem:[%s186 + $0xa8] sm:$0xff] %v1661
        %1726 = vst [vmem:[%s186 + $0xb0] sm:$0xff] %v1662
        %1727 = vst [vmem:[%s186 + $0xb8] sm:$0xff] %v1663
        %1728 = vst [vmem:[%s186 + $0xc0] sm:$0xff] %v1664
        %1729 = vst [vmem:[%s186 + $0xc8] sm:$0xff] %v1665
        %1730 = vst [vmem:[%s186 + $0xd0] sm:$0xff] %v1666
        %1731 = vst [vmem:[%s186 + $0xd8] sm:$0xff] %v1667
        %1732 = vst [vmem:[%s186 + $0xe0] sm:$0xff] %v1668
        %1733 = vst [vmem:[%s186 + $0xe8] sm:$0xff] %v1669
        %1734 = vst [vmem:[%s186 + $0xf0] sm:$0xff] %v1670
        %1735 = vst [vmem:[%s186 + $0xf8] sm:$0xff] %v1671
        %1736 = vst [vmem:[%s186 + $0x100] sm:$0xff] %v1672
        %1737 = vst [vmem:[%s186 + $0x108] sm:$0xff] %v1673
        %1738 = vst [vmem:[%s186 + $0x110] sm:$0xff] %v1674
        %1739 = vst [vmem:[%s186 + $0x118] sm:$0xff] %v1675
        %1740 = vst [vmem:[%s186 + $0x120] sm:$0xff] %v1676
        %1741 = vst [vmem:[%s186 + $0x128] sm:$0xff] %v1677
        %1742 = vst [vmem:[%s186 + $0x130] sm:$0xff] %v1678
        %1743 = vst [vmem:[%s186 + $0x138] sm:$0xff] %v1679
        %1744 = vst [vmem:[%s186 + $0x140] sm:$0xff] %v1680
        %1745 = vst [vmem:[%s186 + $0x148] sm:$0xff] %v1681
        %1746 = vst [vmem:[%s186 + $0x150] sm:$0xff] %v1682
        %1747 = vst [vmem:[%s186 + $0x158] sm:$0xff] %v1683
        %1748 = vst [vmem:[%s186 + $0x160] sm:$0xff] %v1684
        %1749 = vst [vmem:[%s186 + $0x168] sm:$0xff] %v1685
        %1750 = vst [vmem:[%s186 + $0x170] sm:$0xff] %v1686
        %1751 = vst [vmem:[%s186 + $0x178] sm:$0xff] %v1687
        %1752 = vst [vmem:[%s186 + $0x180] sm:$0xff] %v1688
        %1753 = vst [vmem:[%s186 + $0x188] sm:$0xff] %v1689
        %1754 = vst [vmem:[%s186 + $0x190] sm:$0xff] %v1690
        %1755 = vst [vmem:[%s186 + $0x198] sm:$0xff] %v1691
        %1756 = vst [vmem:[%s186 + $0x1a0] sm:$0xff] %v1692
        %1757 = vst [vmem:[%s186 + $0x1a8] sm:$0xff] %v1693
        %1758 = vst [vmem:[%s186 + $0x1b0] sm:$0xff] %v1694
        %1759 = vst [vmem:[%s186 + $0x1b8] sm:$0xff] %v1695
        %1760 = vst [vmem:[%s186 + $0x1c0] sm:$0xff] %v1696
        %1761 = vst [vmem:[%s186 + $0x1c8] sm:$0xff] %v1697
        %1762 = vst [vmem:[%s186 + $0x1d0] sm:$0xff] %v1698
        %1763 = vst [vmem:[%s186 + $0x1d8] sm:$0xff] %v1699
        %1764 = vst [vmem:[%s186 + $0x1e0] sm:$0xff] %v1700
        %1765 = vst [vmem:[%s186 + $0x1e8] sm:$0xff] %v1701
        %1766 = vst [vmem:[%s186 + $0x1f0] sm:$0xff] %v1702
        %1767 = vst [vmem:[%s186 + $0x1f8] sm:$0xff] %v1703
        %s1768 = sand.u32 %s96, 1
        %s1769 = scalar_lea.sflag [#allocation5], %s1768
        %s1770 = sand.u32 %s96, 1
        %s1771 = smul.addr %s1770, 512
        %s1772 = scalar_lea.vmem [#allocation6], %s1771
        // Predicated region
        $region37: #{tpu_custom_call.1} parent=31 // pred_check
          %p1773 = pneg %p106
        $region38: #{tpu_custom_call.1} parent=31 // pred_check_branch
          %1775 = sbr.rel (%p1773) target = $region40
        $region39: #{tpu_custom_call.1} parent=31 // pred_region
          %s1776 = smul.u32 16, %s20
          %s1778 = ssub.s32 8192, 8192
          %1779 = vsyncadd %s1769, %s1778
          %s1780 = smul.addr %s1776, 128
          %s1781 = scalar_lea.hbm %s3, %s1780
          %s1782 = sshll.u32 %s1772, 4
          %s1783 = int_to_ptr.vmem [resolvable:$true] %s1782
          %1788 = dma.vmem_to_hbm [thread:$0]  %s1783, 8192, %s1781, %s1769, 2048, 4096, 128
        $region40: #{tpu_custom_call.1} parent=31 // pred_fallthru
          _
      $region32: #{tpu_custom_call.1} parent=5 // pred_fallthru
        _
      %p1789 = scmp.le.s32.totalorder 2, %s15
      // Predicated region
      $region41: #{tpu_custom_call.1} parent=5 // pred_check
        %p1790 = pneg %p1789
      $region42: #{tpu_custom_call.1} parent=5 // pred_check_branch
        %1792 = sbr.rel (%p1790) target = $region44
      $region43: #{tpu_custom_call.1} parent=5 // pred_region
        %s1793 = ssub.s32 %s15, 2
        // Predicated region
        $region45: #{tpu_custom_call.1} parent=43 // pred_check
          %p1794 = pneg %p112
        $region46: #{tpu_custom_call.1} parent=43 // pred_check_branch
          %1796 = sbr.rel (%p1794) target = $region48
        $region47: #{tpu_custom_call.1} parent=43 // pred_region
          %s1797 = sand.u32 %s97, 1
          %s1798 = scalar_lea.sflag [#allocation5], %s1797
          %s1799 = sand.u32 %s97, 1
          %s1800 = smul.addr %s1799, 512
          %s1801 = scalar_lea.vmem [#allocation6], %s1800
          %1802 = dma.done %s1798, 8192
        $region48: #{tpu_custom_call.1} parent=43 // pred_fallthru
          _
      $region44: #{tpu_custom_call.1} parent=5 // pred_fallthru
        _
    $region6: #{tpu_custom_call.1} parent=1 // loop_footer
      %s19 = sadd.s32 1, %s15
    $region7: #{tpu_custom_call.1} parent=1 // loop_footer_branch
      %14 = sbr.rel target = $region3
    $region8: #{tpu_custom_call.1} parent=1 // loop_exit
      _
    %1803 = vsyncpa [#allocation4], 1
    %s1804 = scalar_lea.sflag [#allocation4], 1
    %1805 = vsyncpa %s1804, 1
    %1806 = vsyncpa [#allocation5], 1
    %s1807 = scalar_lea.sflag [#allocation5], 1
    %1808 = vsyncpa %s1807, 1

</llo_original>
